<compile_context>
chip_gen: v5e
topology: v5e:2x2
jax: 0.10.0
libtpu: 0.0.40
codegen_flags: <defaults>
</compile_context>

<pallas_src>
import functools

import jax
import jax.numpy as jnp
from jax.experimental import pallas as pl
from jax.experimental.pallas import tpu as pltpu

HIGHEST = jax.lax.Precision.HIGHEST


def _split_hi_lo(x):
    """Split f32 into bf16 hi/lo halves: x ~= hi + lo keeps ~16 mantissa bits."""
    hi = x.astype(jnp.bfloat16)
    lo = (x - hi.astype(jnp.float32)).astype(jnp.bfloat16)
    return hi, lo


def _dot_f32_by_bf16const(x_f32, w_bf16):
    """f32 @ (bf16-exact constant) with two single-pass bf16 MXU matmuls (~1e-5 rel)."""
    hi, lo = _split_hi_lo(x_f32)
    return (jnp.dot(hi, w_bf16, preferred_element_type=jnp.float32)
            + jnp.dot(lo, w_bf16, preferred_element_type=jnp.float32))


# ------------------------------------------------------------------ pass 1: pooling
def pool_kernel(x_ref, p_ref, scale_ref, y_ref):
    k = pl.program_id(1)

    @pl.when(k == 0)
    def _():
        y_ref[...] = jnp.zeros_like(y_ref)

    x = x_ref[...].astype(jnp.float32)                       # (rt, ct), lane-dense
    y_ref[...] += _dot_f32_by_bf16const(x, p_ref[...])       # accumulate over HW chunks

    @pl.when(k == pl.num_programs(1) - 1)
    def _():
        y_ref[...] = y_ref[...] * scale_ref[...]             # 1/W | 1/H segment means


# ------------------------------------- pass 2: conv1 -> BN -> ReLU -> conv_h/conv_w
def fc_kernel(xh_ref, xw_ref, w1_ref, b1_ref, gamma_ref, beta_ref,
              wh_ref, bh_ref, ww_ref, bw_ref, ah_ref, aw_ref, *, eps):
    w1 = w1_ref[...]
    b1 = b1_ref[...]
    # conv1 (1x1), channels-first, batched over N = B*H / B*W columns.
    hh = jnp.dot(w1, xh_ref[...], precision=HIGHEST,
                 preferred_element_type=jnp.float32) + b1    # (hidden, B*H)
    hw = jnp.dot(w1, xw_ref[...], precision=HIGHEST,
                 preferred_element_type=jnp.float32) + b1    # (hidden, B*W)

    # BatchNorm2d forward, training-mode batch stats over (B, H+W) per hidden channel;
    # two-pass variance (avoids E[x^2]-mu^2 cancellation), biased as in PyTorch.
    n = float(hh.shape[1] + hw.shape[1])
    mu = (jnp.sum(hh, axis=1, keepdims=True)
          + jnp.sum(hw, axis=1, keepdims=True)) / n
    dh = hh - mu
    dw = hw - mu
    var = (jnp.sum(dh * dh, axis=1, keepdims=True)
           + jnp.sum(dw * dw, axis=1, keepdims=True)) / n
    scale = gamma_ref[...] * jax.lax.rsqrt(var + eps)
    shift = beta_ref[...] - mu * scale

    nh = jnp.maximum(hh * scale + shift, 0.0)                # BN + ReLU, H strip
    nw = jnp.maximum(hw * scale + shift, 0.0)                # BN + ReLU, W strip
    ah_ref[...] = jnp.dot(wh_ref[...], nh, precision=HIGHEST,
                          preferred_element_type=jnp.float32) + bh_ref[...]
    aw_ref[...] = jnp.dot(ww_ref[...], nw, precision=HIGHEST,
                          preferred_element_type=jnp.float32) + bw_ref[...]


# ------------------------------------------------------------------ pass 3: gating
def gate_kernel(x_ref, ah_ref, aw_ref, eh_ref, ew_ref, out_ref):
    # Expand per-row gate factors to the lane-dense (rt, ct) layout via 0/1 matrices.
    gh = _dot_f32_by_bf16const(ah_ref[...], eh_ref[...])     # gh[r, h*W+w] = a_h[r, h]
    gw = _dot_f32_by_bf16const(aw_ref[...], ew_ref[...])     # gw[r, h*W+w] = a_w[r, w]
    out_ref[...] = (x_ref[...].astype(jnp.float32) * (gh * gw)).astype(out_ref.dtype)


# ------------------------------------------------------------------ tiling helpers
def _row_tile(n_rows, bytes_per_row, *, vmem_target=2 << 20, min_steps=8):
    """Largest multiple-of-8 row tile dividing n_rows whose streamed block fits
    vmem_target, preferring tiles that leave >= min_steps (and an even number of)
    grid steps for pipeline fill / megacore balance.  Falls back to 8 rows."""
    fitting = [t for t in range(8, n_rows + 1, 8)
               if n_rows % t == 0 and t * bytes_per_row <= vmem_target]
    if not fitting:
        return 8
    pipelined = [t for t in fitting if n_rows // t >= min_steps]
    if pipelined:
        even = [t for t in pipelined if (n_rows // t) % 2 == 0]
        return max(even) if even else max(pipelined)
    return max(fitting)


def _hw_tile(hw, bytes_per_col, *, vmem_target=2 << 20):
    """Chunk of the flattened spatial axis: full HW when the per-column constant
    footprint fits, else the largest 128-multiple divisor of HW that fits."""
    if hw * bytes_per_col <= vmem_target or hw % 128 != 0:
        return hw
    best = 128
    for t in range(128, hw + 1, 128):
        if hw % t == 0 and t * bytes_per_col <= vmem_target:
            best = t
    return best


def _full_spec(shape):
    return pl.BlockSpec(shape, lambda *_: (0,) * len(shape))


# ------------------------------------------------------------------ wrapper
@functools.partial(jax.jit, static_argnames=("eps",))
def coordinate_attention(x, params, *, eps=1e-5):
    """x: (B, C, H, W) float32, NCHW exactly as the PyTorch module."""
    w1, b1, gamma, beta, wh, bh, ww, bw = params
    B, C, H, W = x.shape
    hidden = w1.shape[0]
    Cout = wh.shape[0]
    assert Cout == C, "CoordinateAttention needs out_dim == in_dim for x * a_h * a_w"
    BC, HW, L = B * C, H * W, H + W
    dt = x.dtype

    # Free, layout-preserving view of x (no transposes of x anywhere); pad rows to 8.
    BC_pad = -(-BC // 8) * 8
    x2 = x.reshape(BC, HW)
    if BC_pad != BC:
        x2 = jnp.pad(x2, ((0, BC_pad - BC), (0, 0)))

    # Constant 0/1 matrices: column s = h*W + w belongs to spatial row h / column w.
    # Exactly representable in bf16 -> half the VMEM + MXU weight-push cost of f32.
    s = jnp.arange(HW, dtype=jnp.int32)
    eh_b = (s[None, :] // W == jnp.arange(H, dtype=jnp.int32)[:, None])    # (H, HW)
    ew_b = (s[None, :] % W == jnp.arange(W, dtype=jnp.int32)[:, None])     # (W, HW)
    pool01 = jnp.concatenate([eh_b.T, ew_b.T], axis=1).astype(jnp.bfloat16)  # (HW, L)
    eh = eh_b.astype(jnp.bfloat16)
    ew = ew_b.astype(jnp.bfloat16)
    # Segment-mean scaling applied once after the HW reduction (exact for any H, W).
    pool_scale = jnp.concatenate([jnp.full((H,), 1.0 / W, jnp.float32),
                                  jnp.full((W,), 1.0 / H, jnp.float32)]).reshape(1, L)

    # Tile sizes: ~2 MiB streamed blocks; chunk HW when the O(HW*(H+W)) constants
    # would collide with scoped VMEM (v5e 16 MiB default, v7x 64 MiB physical).
    ct = _hw_tile(HW, 2 * L)                  # bf16 constants: 2*L bytes per column
    rt1 = _row_tile(BC_pad, 4 * ct)           # pass 1 streams x only
    rt3 = _row_tile(BC_pad, 8 * ct)           # pass 3 streams x in + out
    par1 = pltpu.CompilerParams(dimension_semantics=("parallel", "arbitrary"))
    par3 = pltpu.CompilerParams(dimension_semantics=("parallel", "parallel"))

    # ---- pass 1: fused coordinate pooling y[:, :H]=mean_W(x), y[:, H:]=mean_H(x) ----
    y2 = pl.pallas_call(
        pool_kernel,
        out_shape=jax.ShapeDtypeStruct((BC_pad, L), jnp.float32),
        grid=(BC_pad // rt1, HW // ct),
        in_specs=[pl.BlockSpec((rt1, ct), lambda i, k: (i, k)),
                  pl.BlockSpec((ct, L), lambda i, k: (k, 0)),
                  pl.BlockSpec((1, L), lambda i, k: (0, 0))],
        out_specs=pl.BlockSpec((rt1, L), lambda i, k: (i, 0)),
        compiler_params=par1,
    )(x2, pool01, pool_scale)

    # ---- pass 2: conv1 -> BN -> ReLU -> conv_h / conv_w (KB-sized, single block) ----
    y3 = y2[:BC].reshape(B, C, L)
    xh = jnp.transpose(y3[:, :, :H], (1, 0, 2)).reshape(C, B * H)   # (C, B*H)
    xw = jnp.transpose(y3[:, :, H:], (1, 0, 2)).reshape(C, B * W)   # (C, B*W)

    ahf, awf = pl.pallas_call(
        functools.partial(fc_kernel, eps=eps),
        out_shape=(jax.ShapeDtypeStruct((Cout, B * H), jnp.float32),
                   jax.ShapeDtypeStruct((Cout, B * W), jnp.float32)),
        grid=(1,),
        in_specs=[_full_spec((C, B * H)), _full_spec((C, B * W)),
                  _full_spec((hidden, C)), _full_spec((hidden, 1)),
                  _full_spec((hidden, 1)), _full_spec((hidden, 1)),
                  _full_spec((Cout, hidden)), _full_spec((Cout, 1)),
                  _full_spec((Cout, hidden)), _full_spec((Cout, 1))],
        out_specs=(_full_spec((Cout, B * H)), _full_spec((Cout, B * W))),
    )(xh, xw,
      w1.astype(jnp.float32), b1.reshape(hidden, 1).astype(jnp.float32),
      gamma.reshape(hidden, 1).astype(jnp.float32),
      beta.reshape(hidden, 1).astype(jnp.float32),
      wh.astype(jnp.float32), bh.reshape(Cout, 1).astype(jnp.float32),
      ww.astype(jnp.float32), bw.reshape(Cout, 1).astype(jnp.float32))

    # Tiny layout plumbing back to (B*C, H|W) rows, padded like x2 (KB-sized tensors).
    ah2 = jnp.transpose(ahf.reshape(Cout, B, H), (1, 0, 2)).reshape(BC, H)
    aw2 = jnp.transpose(awf.reshape(Cout, B, W), (1, 0, 2)).reshape(BC, W)
    if BC_pad != BC:
        ah2 = jnp.pad(ah2, ((0, BC_pad - BC), (0, 0)))
        aw2 = jnp.pad(aw2, ((0, BC_pad - BC), (0, 0)))

    # ---- pass 3: streamed elementwise gating (lane-dense read + write of x) ----
    out2 = pl.pallas_call(
        gate_kernel,
        out_shape=jax.ShapeDtypeStruct((BC_pad, HW), dt),
        grid=(BC_pad // rt3, HW // ct),
        in_specs=[pl.BlockSpec((rt3, ct), lambda i, j: (i, j)),
                  pl.BlockSpec((rt3, H), lambda i, j: (i, 0)),
                  pl.BlockSpec((rt3, W), lambda i, j: (i, 0)),
                  pl.BlockSpec((H, ct), lambda i, j: (0, j)),
                  pl.BlockSpec((W, ct), lambda i, j: (0, j))],
        out_specs=pl.BlockSpec((rt3, ct), lambda i, j: (i, j)),
        compiler_params=par3,
    )(x2, ah2, aw2, eh, ew)

    return out2[:BC].reshape(B, C, H, W)


# ------------------------------------------------------------------ pure-JAX reference
def reference(x, params, eps=1e-5):
    """Mirror of the PyTorch forward (training-mode BN), NCHW."""
    w1, b1, gamma, beta, wh, bh, ww, bw = params
    B, C, H, W = x.shape
    x_h = jnp.mean(x, axis=3)                                   # (B, C, H)
    x_w = jnp.mean(x, axis=2)                                   # (B, C, W)
    y = jnp.concatenate([x_h, x_w], axis=2)                     # (B, C, H+W)
    y = jnp.einsum('kc,bcl->bkl', w1, y, precision=HIGHEST) + b1[None, :, None]
    mu = jnp.mean(y, axis=(0, 2), keepdims=True)
    var = jnp.mean((y - mu) ** 2, axis=(0, 2), keepdims=True)
    y = (y - mu) / jnp.sqrt(var + eps)
    y = y * gamma[None, :, None] + beta[None, :, None]
    y = jnp.maximum(y, 0.0)
    yh, yw = y[:, :, :H], y[:, :, H:]
    a_h = jnp.einsum('ok,bkh->boh', wh, yh, precision=HIGHEST) + bh[None, :, None]
    a_w = jnp.einsum('ok,bkw->bow', ww, yw, precision=HIGHEST) + bw[None, :, None]
    return x * a_h[:, :, :, None] * a_w[:, :, None, :]


if __name__ == "__main__":
    B, C, H, W = 2, 4, 16, 16
    reduction = 32
    hidden = max(8, C // reduction)     # == 8
    Cout = C                            # out_dim must equal in_dim for the final product

    key = jax.random.PRNGKey(0)
    ks = jax.random.split(key, 7)
    x = jax.random.normal(ks[0], (B, C, H, W), jnp.float32)

    # Parameters stored in the native PyTorch conv orientation: weight[:, :, 0, 0].
    w1 = 0.1 * jax.random.normal(ks[1], (hidden, C), jnp.float32)
    b1 = 0.1 * jax.random.normal(ks[2], (hidden,), jnp.float32)
    gamma = jnp.ones((hidden,), jnp.float32)    # bn1.weight default init
    beta = jnp.zeros((hidden,), jnp.float32)    # bn1.bias default init
    wh = 0.1 * jax.random.normal(ks[3], (Cout, hidden), jnp.float32)
    bh = 0.1 * jax.random.normal(ks[4], (Cout,), jnp.float32)
    ww = 0.1 * jax.random.normal(ks[5], (Cout, hidden), jnp.float32)
    bw = 0.1 * jax.random.normal(ks[6], (Cout,), jnp.float32)
    params = (w1, b1, gamma, beta, wh, bh, ww, bw)

    out = jax.block_until_ready(coordinate_attention(x, params))
    assert out.shape == (B, Cout, H, W), out.shape

    ref = jax.block_until_ready(reference(x, params))
    err = float(jnp.max(jnp.abs(out - ref)))
    assert jnp.allclose(out, ref, rtol=1e-3, atol=1e-3), err

    print("KERNEL_OK")
</pallas_src>

<mosaic_0001>
module attributes {stable_mosaic.version = 11 : i64} {
  func.func @pool_kernel(%arg0: i32, %arg1: i32, %arg2: memref<8x256xf32, #tpu.memory_space<vmem>>, %arg3: memref<256x32xbf16, #tpu.memory_space<vmem>>, %arg4: memref<1x32xf32, #tpu.memory_space<vmem>>, %arg5: memref<8x32xf32, #tpu.memory_space<vmem>>) attributes {dimension_semantics = [#tpu.dimension_semantics<parallel>, #tpu.dimension_semantics<arbitrary>], iteration_bounds = array<i64: 1, 1>, scalar_prefetch = 0 : i64, scratch_operands = 0 : i64, tpu.core_type = #tpu.core_type<tc>, window_params = [{transform_indices = @transform_0, window_bounds = array<i64: 8, 256>}, {transform_indices = @transform_1, window_bounds = array<i64: 256, 32>}, {pipeline_mode = #tpu.pipeline_mode<synchronous>, transform_indices = @transform_2, window_bounds = array<i64: 1, 32>}, {transform_indices = @transform_3, window_bounds = array<i64: 8, 32>}]} {
    %c0_i32 = arith.constant 0 : i32
    %0 = arith.cmpi eq, %arg1, %c0_i32 : i32
    %1 = arith.extui %0 : i1 to i32
    %c0_i32_0 = arith.constant 0 : i32
    %2 = arith.cmpi ne, %1, %c0_i32_0 : i32
    scf.if %2 {
      %cst_11 = arith.constant 0.000000e+00 : f32
      %18 = vector.broadcast %cst_11 : f32 to vector<8x32xf32>
      %c0_12 = arith.constant 0 : index
      %c0_13 = arith.constant 0 : index
      %19 = vector.load %arg5[%c0_12, %c0_13] : memref<8x32xf32, #tpu.memory_space<vmem>>, vector<8x32xf32>
      tpu.vector_store %arg5[%c0_12, %c0_13], %18 {strides = array<i32>} : memref<8x32xf32, #tpu.memory_space<vmem>>, vector<8x32xf32>,
    } else {
    }
    %c0 = arith.constant 0 : index
    %c0_1 = arith.constant 0 : index
    %3 = vector.load %arg2[%c0, %c0_1] : memref<8x256xf32, #tpu.memory_space<vmem>>, vector<8x256xf32>
    %c0_2 = arith.constant 0 : index
    %c0_3 = arith.constant 0 : index
    %4 = vector.load %arg5[%c0_2, %c0_3] : memref<8x32xf32, #tpu.memory_space<vmem>>, vector<8x32xf32>
    %c0_4 = arith.constant 0 : index
    %c0_5 = arith.constant 0 : index
    %5 = vector.load %arg3[%c0_4, %c0_5] : memref<256x32xbf16, #tpu.memory_space<vmem>>, vector<256x32xbf16>
    %6 = arith.truncf %3 : vector<8x256xf32> to vector<8x256xbf16>
    %7 = arith.extf %6 : vector<8x256xbf16> to vector<8x256xf32>
    %8 = arith.subf %3, %7 : vector<8x256xf32>
    %9 = arith.truncf %8 : vector<8x256xf32> to vector<8x256xbf16>
    %cst = arith.constant dense<0.000000e+00> : vector<8x32xf32>
    %10 = tpu.matmul %6, %5, %cst {dimension_numbers = #tpu.dot_dimension_numbers<[1], [0], [0], [1], [0, 0, 1, 1], [], []>} : vector<8x256xbf16>, vector<256x32xbf16>, vector<8x32xf32> -> vector<8x32xf32>
    %cst_6 = arith.constant dense<0.000000e+00> : vector<8x32xf32>
    %11 = tpu.matmul %9, %5, %cst_6 {dimension_numbers = #tpu.dot_dimension_numbers<[1], [0], [0], [1], [0, 0, 1, 1], [], []>} : vector<8x256xbf16>, vector<256x32xbf16>, vector<8x32xf32> -> vector<8x32xf32>
    %12 = arith.addf %10, %11 : vector<8x32xf32>
    %13 = arith.addf %4, %12 : vector<8x32xf32>
    %c0_7 = arith.constant 0 : index
    %c0_8 = arith.constant 0 : index
    %14 = vector.load %arg5[%c0_7, %c0_8] : memref<8x32xf32, #tpu.memory_space<vmem>>, vector<8x32xf32>
    tpu.vector_store %arg5[%c0_7, %c0_8], %13 {strides = array<i32>} : memref<8x32xf32, #tpu.memory_space<vmem>>, vector<8x32xf32>,
    %c0_i32_9 = arith.constant 0 : i32
    %15 = arith.cmpi eq, %arg1, %c0_i32_9 : i32
    %16 = arith.extui %15 : i1 to i32
    %c0_i32_10 = arith.constant 0 : i32
    %17 = arith.cmpi ne, %16, %c0_i32_10 : i32
    scf.if %17 {
      %c0_11 = arith.constant 0 : index
      %c0_12 = arith.constant 0 : index
      %18 = vector.load %arg5[%c0_11, %c0_12] : memref<8x32xf32, #tpu.memory_space<vmem>>, vector<8x32xf32>
      %c0_13 = arith.constant 0 : index
      %c0_14 = arith.constant 0 : index
      %19 = vector.load %arg4[%c0_13, %c0_14] : memref<1x32xf32, #tpu.memory_space<vmem>>, vector<1x32xf32>
      %20 = vector.broadcast %19 : vector<1x32xf32> to vector<8x32xf32>
      %21 = arith.mulf %18, %20 : vector<8x32xf32>
      %c0_15 = arith.constant 0 : index
      %c0_16 = arith.constant 0 : index
      %22 = vector.load %arg5[%c0_15, %c0_16] : memref<8x32xf32, #tpu.memory_space<vmem>>, vector<8x32xf32>
      tpu.vector_store %arg5[%c0_15, %c0_16], %21 {strides = array<i32>} : memref<8x32xf32, #tpu.memory_space<vmem>>, vector<8x32xf32>,
    } else {
    }
    return
  }
  func.func @transform_0(%arg0: i32, %arg1: i32) -> (i32, i32) {
    %c0_i32 = arith.constant 0 : i32
    return %arg0, %arg1 : i32, i32
  }
  func.func @transform_1(%arg0: i32, %arg1: i32) -> (i32, i32) {
    %c0_i32 = arith.constant 0 : i32
    %c0_i32_0 = arith.constant 0 : i32
    return %arg1, %c0_i32 : i32, i32
  }
  func.func @transform_2(%arg0: i32, %arg1: i32) -> (i32, i32) {
    %c0_i32 = arith.constant 0 : i32
    %c0_i32_0 = arith.constant 0 : i32
    %c0_i32_1 = arith.constant 0 : i32
    return %c0_i32, %c0_i32_0 : i32, i32
  }
  func.func @transform_3(%arg0: i32, %arg1: i32) -> (i32, i32) {
    %c0_i32 = arith.constant 0 : i32
    %c0_i32_0 = arith.constant 0 : i32
    return %arg0, %c0_i32 : i32, i32
  }
}

module attributes {stable_mosaic.version = 11 : i64} {
  func.func @gate_kernel(%arg0: i32, %arg1: i32, %arg2: memref<8x256xf32, #tpu.memory_space<vmem>>, %arg3: memref<8x16xf32, #tpu.memory_space<vmem>>, %arg4: memref<8x16xf32, #tpu.memory_space<vmem>>, %arg5: memref<16x256xbf16, #tpu.memory_space<vmem>>, %arg6: memref<16x256xbf16, #tpu.memory_space<vmem>>, %arg7: memref<8x256xf32, #tpu.memory_space<vmem>>) attributes {dimension_semantics = [#tpu.dimension_semantics<parallel>, #tpu.dimension_semantics<parallel>], iteration_bounds = array<i64: 1, 1>, scalar_prefetch = 0 : i64, scratch_operands = 0 : i64, tpu.core_type = #tpu.core_type<tc>, window_params = [{transform_indices = @transform_0, window_bounds = array<i64: 8, 256>}, {transform_indices = @transform_1, window_bounds = array<i64: 8, 16>}, {transform_indices = @transform_2, window_bounds = array<i64: 8, 16>}, {transform_indices = @transform_3, window_bounds = array<i64: 16, 256>}, {transform_indices = @transform_4, window_bounds = array<i64: 16, 256>}, {transform_indices = @transform_5, window_bounds = array<i64: 8, 256>}]} {
    %c0 = arith.constant 0 : index
    %c0_0 = arith.constant 0 : index
    %0 = vector.load %arg3[%c0, %c0_0] : memref<8x16xf32, #tpu.memory_space<vmem>>, vector<8x16xf32>
    %c0_1 = arith.constant 0 : index
    %c0_2 = arith.constant 0 : index
    %1 = vector.load %arg5[%c0_1, %c0_2] : memref<16x256xbf16, #tpu.memory_space<vmem>>, vector<16x256xbf16>
    %2 = arith.truncf %0 : vector<8x16xf32> to vector<8x16xbf16>
    %3 = arith.extf %2 : vector<8x16xbf16> to vector<8x16xf32>
    %4 = arith.subf %0, %3 : vector<8x16xf32>
    %5 = arith.truncf %4 : vector<8x16xf32> to vector<8x16xbf16>
    %cst = arith.constant dense<0.000000e+00> : vector<8x256xf32>
    %6 = tpu.matmul %2, %1, %cst {dimension_numbers = #tpu.dot_dimension_numbers<[1], [0], [0], [1], [0, 0, 1, 1], [], []>} : vector<8x16xbf16>, vector<16x256xbf16>, vector<8x256xf32> -> vector<8x256xf32>
    %cst_3 = arith.constant dense<0.000000e+00> : vector<8x256xf32>
    %7 = tpu.matmul %5, %1, %cst_3 {dimension_numbers = #tpu.dot_dimension_numbers<[1], [0], [0], [1], [0, 0, 1, 1], [], []>} : vector<8x16xbf16>, vector<16x256xbf16>, vector<8x256xf32> -> vector<8x256xf32>
    %8 = arith.addf %6, %7 : vector<8x256xf32>
    %c0_4 = arith.constant 0 : index
    %c0_5 = arith.constant 0 : index
    %9 = vector.load %arg4[%c0_4, %c0_5] : memref<8x16xf32, #tpu.memory_space<vmem>>, vector<8x16xf32>
    %c0_6 = arith.constant 0 : index
    %c0_7 = arith.constant 0 : index
    %10 = vector.load %arg6[%c0_6, %c0_7] : memref<16x256xbf16, #tpu.memory_space<vmem>>, vector<16x256xbf16>
    %11 = arith.truncf %9 : vector<8x16xf32> to vector<8x16xbf16>
    %12 = arith.extf %11 : vector<8x16xbf16> to vector<8x16xf32>
    %13 = arith.subf %9, %12 : vector<8x16xf32>
    %14 = arith.truncf %13 : vector<8x16xf32> to vector<8x16xbf16>
    %cst_8 = arith.constant dense<0.000000e+00> : vector<8x256xf32>
    %15 = tpu.matmul %11, %10, %cst_8 {dimension_numbers = #tpu.dot_dimension_numbers<[1], [0], [0], [1], [0, 0, 1, 1], [], []>} : vector<8x16xbf16>, vector<16x256xbf16>, vector<8x256xf32> -> vector<8x256xf32>
    %cst_9 = arith.constant dense<0.000000e+00> : vector<8x256xf32>
    %16 = tpu.matmul %14, %10, %cst_9 {dimension_numbers = #tpu.dot_dimension_numbers<[1], [0], [0], [1], [0, 0, 1, 1], [], []>} : vector<8x16xbf16>, vector<16x256xbf16>, vector<8x256xf32> -> vector<8x256xf32>
    %17 = arith.addf %15, %16 : vector<8x256xf32>
    %c0_10 = arith.constant 0 : index
    %c0_11 = arith.constant 0 : index
    %18 = vector.load %arg2[%c0_10, %c0_11] : memref<8x256xf32, #tpu.memory_space<vmem>>, vector<8x256xf32>
    %19 = arith.mulf %8, %17 : vector<8x256xf32>
    %20 = arith.mulf %18, %19 : vector<8x256xf32>
    %c0_12 = arith.constant 0 : index
    %c0_13 = arith.constant 0 : index
    %21 = vector.load %arg7[%c0_12, %c0_13] : memref<8x256xf32, #tpu.memory_space<vmem>>, vector<8x256xf32>
    tpu.vector_store %arg7[%c0_12, %c0_13], %20 {strides = array<i32>} : memref<8x256xf32, #tpu.memory_space<vmem>>, vector<8x256xf32>,
    return
  }
  func.func @transform_0(%arg0: i32, %arg1: i32) -> (i32, i32) {
    %c0_i32 = arith.constant 0 : i32
    return %arg0, %arg1 : i32, i32
  }
  func.func @transform_1(%arg0: i32, %arg1: i32) -> (i32, i32) {
    %c0_i32 = arith.constant 0 : i32
    %c0_i32_0 = arith.constant 0 : i32
    return %arg0, %c0_i32 : i32, i32
  }
  func.func @transform_2(%arg0: i32, %arg1: i32) -> (i32, i32) {
    %c0_i32 = arith.constant 0 : i32
    %c0_i32_0 = arith.constant 0 : i32
    return %arg0, %c0_i32 : i32, i32
  }
  func.func @transform_3(%arg0: i32, %arg1: i32) -> (i32, i32) {
    %c0_i32 = arith.constant 0 : i32
    %c0_i32_0 = arith.constant 0 : i32
    return %c0_i32, %arg1 : i32, i32
  }
  func.func @transform_4(%arg0: i32, %arg1: i32) -> (i32, i32) {
    %c0_i32 = arith.constant 0 : i32
    %c0_i32_0 = arith.constant 0 : i32
    return %c0_i32, %arg1 : i32, i32
  }
  func.func @transform_5(%arg0: i32, %arg1: i32) -> (i32, i32) {
    %c0_i32 = arith.constant 0 : i32
    return %arg0, %arg1 : i32, i32
  }
}

module attributes {stable_mosaic.version = 11 : i64} {
  func.func @fc_kernel(%arg0: i32, %arg1: memref<4x32xf32, #tpu.memory_space<vmem>>, %arg2: memref<4x32xf32, #tpu.memory_space<vmem>>, %arg3: memref<8x4xf32, #tpu.memory_space<vmem>>, %arg4: memref<8x1xf32, #tpu.memory_space<vmem>>, %arg5: memref<8x1xf32, #tpu.memory_space<vmem>>, %arg6: memref<8x1xf32, #tpu.memory_space<vmem>>, %arg7: memref<4x8xf32, #tpu.memory_space<vmem>>, %arg8: memref<4x1xf32, #tpu.memory_space<vmem>>, %arg9: memref<4x8xf32, #tpu.memory_space<vmem>>, %arg10: memref<4x1xf32, #tpu.memory_space<vmem>>, %arg11: memref<4x32xf32, #tpu.memory_space<vmem>>, %arg12: memref<4x32xf32, #tpu.memory_space<vmem>>) attributes {dimension_semantics = [#tpu.dimension_semantics<arbitrary>], iteration_bounds = array<i64: 1>, scalar_prefetch = 0 : i64, scratch_operands = 0 : i64, tpu.core_type = #tpu.core_type<tc>, window_params = [{pipeline_mode = #tpu.pipeline_mode<synchronous>, transform_indices = @transform_0, window_bounds = array<i64: 4, 32>}, {pipeline_mode = #tpu.pipeline_mode<synchronous>, transform_indices = @transform_1, window_bounds = array<i64: 4, 32>}, {pipeline_mode = #tpu.pipeline_mode<synchronous>, transform_indices = @transform_2, window_bounds = array<i64: 8, 4>}, {pipeline_mode = #tpu.pipeline_mode<synchronous>, transform_indices = @transform_3, window_bounds = array<i64: 8, 1>}, {pipeline_mode = #tpu.pipeline_mode<synchronous>, transform_indices = @transform_4, window_bounds = array<i64: 8, 1>}, {pipeline_mode = #tpu.pipeline_mode<synchronous>, transform_indices = @transform_5, window_bounds = array<i64: 8, 1>}, {pipeline_mode = #tpu.pipeline_mode<synchronous>, transform_indices = @transform_6, window_bounds = array<i64: 4, 8>}, {pipeline_mode = #tpu.pipeline_mode<synchronous>, transform_indices = @transform_7, window_bounds = array<i64: 4, 1>}, {pipeline_mode = #tpu.pipeline_mode<synchronous>, transform_indices = @transform_8, window_bounds = array<i64: 4, 8>}, {pipeline_mode = #tpu.pipeline_mode<synchronous>, transform_indices = @transform_9, window_bounds = array<i64: 4, 1>}, {pipeline_mode = #tpu.pipeline_mode<synchronous>, transform_indices = @transform_10, window_bounds = array<i64: 4, 32>}, {pipeline_mode = #tpu.pipeline_mode<synchronous>, transform_indices = @transform_11, window_bounds = array<i64: 4, 32>}]} {
    %c0 = arith.constant 0 : index
    %c0_0 = arith.constant 0 : index
    %0 = vector.load %arg3[%c0, %c0_0] : memref<8x4xf32, #tpu.memory_space<vmem>>, vector<8x4xf32>
    %c0_1 = arith.constant 0 : index
    %c0_2 = arith.constant 0 : index
    %1 = vector.load %arg4[%c0_1, %c0_2] : memref<8x1xf32, #tpu.memory_space<vmem>>, vector<8x1xf32>
    %c0_3 = arith.constant 0 : index
    %c0_4 = arith.constant 0 : index
    %2 = vector.load %arg1[%c0_3, %c0_4] : memref<4x32xf32, #tpu.memory_space<vmem>>, vector<4x32xf32>
    %cst = arith.constant dense<0.000000e+00> : vector<8x32xf32>
    %3 = tpu.matmul %0, %2, %cst {dimension_numbers = #tpu.dot_dimension_numbers<[1], [0], [0], [1], [0, 0, 1, 1], [], []>, precision = #tpu.contract_precision<fp32>} : vector<8x4xf32>, vector<4x32xf32>, vector<8x32xf32> -> vector<8x32xf32>
    %4 = vector.broadcast %1 : vector<8x1xf32> to vector<8x32xf32>
    %5 = arith.addf %3, %4 : vector<8x32xf32>
    %c0_5 = arith.constant 0 : index
    %c0_6 = arith.constant 0 : index
    %6 = vector.load %arg2[%c0_5, %c0_6] : memref<4x32xf32, #tpu.memory_space<vmem>>, vector<4x32xf32>
    %cst_7 = arith.constant dense<0.000000e+00> : vector<8x32xf32>
    %7 = tpu.matmul %0, %6, %cst_7 {dimension_numbers = #tpu.dot_dimension_numbers<[1], [0], [0], [1], [0, 0, 1, 1], [], []>, precision = #tpu.contract_precision<fp32>} : vector<8x4xf32>, vector<4x32xf32>, vector<8x32xf32> -> vector<8x32xf32>
    %8 = vector.broadcast %1 : vector<8x1xf32> to vector<8x32xf32>
    %9 = arith.addf %7, %8 : vector<8x32xf32>
    %cst_8 = arith.constant dense<0.000000e+00> : vector<8xf32>
    %10 = vector.multi_reduction <add>, %5, %cst_8 [1] : vector<8x32xf32> to vector<8xf32>
    %11 = vector.shape_cast %10 : vector<8xf32> to vector<8x1xf32>
    %cst_9 = arith.constant dense<0.000000e+00> : vector<8xf32>
    %12 = vector.multi_reduction <add>, %9, %cst_9 [1] : vector<8x32xf32> to vector<8xf32>
    %13 = vector.shape_cast %12 : vector<8xf32> to vector<8x1xf32>
    %14 = arith.addf %11, %13 : vector<8x1xf32>
    %cst_10 = arith.constant 6.400000e+01 : f32
    %15 = vector.broadcast %cst_10 : f32 to vector<8x1xf32>
    %16 = arith.divf %14, %15 : vector<8x1xf32>
    %17 = vector.broadcast %16 : vector<8x1xf32> to vector<8x32xf32>
    %18 = arith.subf %5, %17 : vector<8x32xf32>
    %19 = vector.broadcast %16 : vector<8x1xf32> to vector<8x32xf32>
    %20 = arith.subf %9, %19 : vector<8x32xf32>
    %21 = arith.mulf %18, %18 : vector<8x32xf32>
    %cst_11 = arith.constant dense<0.000000e+00> : vector<8xf32>
    %22 = vector.multi_reduction <add>, %21, %cst_11 [1] : vector<8x32xf32> to vector<8xf32>
    %23 = vector.shape_cast %22 : vector<8xf32> to vector<8x1xf32>
    %24 = arith.mulf %20, %20 : vector<8x32xf32>
    %cst_12 = arith.constant dense<0.000000e+00> : vector<8xf32>
    %25 = vector.multi_reduction <add>, %24, %cst_12 [1] : vector<8x32xf32> to vector<8xf32>
    %26 = vector.shape_cast %25 : vector<8xf32> to vector<8x1xf32>
    %27 = arith.addf %23, %26 : vector<8x1xf32>
    %cst_13 = arith.constant 6.400000e+01 : f32
    %28 = vector.broadcast %cst_13 : f32 to vector<8x1xf32>
    %29 = arith.divf %27, %28 : vector<8x1xf32>
    %c0_14 = arith.constant 0 : index
    %c0_15 = arith.constant 0 : index
    %30 = vector.load %arg5[%c0_14, %c0_15] : memref<8x1xf32, #tpu.memory_space<vmem>>, vector<8x1xf32>
    %cst_16 = arith.constant 9.99999974E-6 : f32
    %31 = vector.broadcast %cst_16 : f32 to vector<8x1xf32>
    %32 = arith.addf %29, %31 : vector<8x1xf32>
    %33 = math.rsqrt %32 : vector<8x1xf32>
    %34 = arith.mulf %30, %33 : vector<8x1xf32>
    %c0_17 = arith.constant 0 : index
    %c0_18 = arith.constant 0 : index
    %35 = vector.load %arg6[%c0_17, %c0_18] : memref<8x1xf32, #tpu.memory_space<vmem>>, vector<8x1xf32>
    %36 = arith.mulf %16, %34 : vector<8x1xf32>
    %37 = arith.subf %35, %36 : vector<8x1xf32>
    %38 = vector.broadcast %34 : vector<8x1xf32> to vector<8x32xf32>
    %39 = arith.mulf %5, %38 : vector<8x32xf32>
    %40 = vector.broadcast %37 : vector<8x1xf32> to vector<8x32xf32>
    %41 = arith.addf %39, %40 : vector<8x32xf32>
    %cst_19 = arith.constant 0.000000e+00 : f32
    %42 = vector.broadcast %cst_19 : f32 to vector<8x32xf32>
    %43 = arith.maximumf %41, %42 : vector<8x32xf32>
    %44 = vector.broadcast %34 : vector<8x1xf32> to vector<8x32xf32>
    %45 = arith.mulf %9, %44 : vector<8x32xf32>
    %46 = vector.broadcast %37 : vector<8x1xf32> to vector<8x32xf32>
    %47 = arith.addf %45, %46 : vector<8x32xf32>
    %cst_20 = arith.constant 0.000000e+00 : f32
    %48 = vector.broadcast %cst_20 : f32 to vector<8x32xf32>
    %49 = arith.maximumf %47, %48 : vector<8x32xf32>
    %c0_21 = arith.constant 0 : index
    %c0_22 = arith.constant 0 : index
    %50 = vector.load %arg7[%c0_21, %c0_22] : memref<4x8xf32, #tpu.memory_space<vmem>>, vector<4x8xf32>
    %cst_23 = arith.constant dense<0.000000e+00> : vector<4x32xf32>
    %51 = tpu.matmul %50, %43, %cst_23 {dimension_numbers = #tpu.dot_dimension_numbers<[1], [0], [0], [1], [0, 0, 1, 1], [], []>, precision = #tpu.contract_precision<fp32>} : vector<4x8xf32>, vector<8x32xf32>, vector<4x32xf32> -> vector<4x32xf32>
    %c0_24 = arith.constant 0 : index
    %c0_25 = arith.constant 0 : index
    %52 = vector.load %arg8[%c0_24, %c0_25] : memref<4x1xf32, #tpu.memory_space<vmem>>, vector<4x1xf32>
    %53 = vector.broadcast %52 : vector<4x1xf32> to vector<4x32xf32>
    %54 = arith.addf %51, %53 : vector<4x32xf32>
    %c0_26 = arith.constant 0 : index
    %c0_27 = arith.constant 0 : index
    %55 = vector.load %arg11[%c0_26, %c0_27] : memref<4x32xf32, #tpu.memory_space<vmem>>, vector<4x32xf32>
    tpu.vector_store %arg11[%c0_26, %c0_27], %54 {strides = array<i32>} : memref<4x32xf32, #tpu.memory_space<vmem>>, vector<4x32xf32>,
    %c0_28 = arith.constant 0 : index
    %c0_29 = arith.constant 0 : index
    %56 = vector.load %arg9[%c0_28, %c0_29] : memref<4x8xf32, #tpu.memory_space<vmem>>, vector<4x8xf32>
    %cst_30 = arith.constant dense<0.000000e+00> : vector<4x32xf32>
    %57 = tpu.matmul %56, %49, %cst_30 {dimension_numbers = #tpu.dot_dimension_numbers<[1], [0], [0], [1], [0, 0, 1, 1], [], []>, precision = #tpu.contract_precision<fp32>} : vector<4x8xf32>, vector<8x32xf32>, vector<4x32xf32> -> vector<4x32xf32>
    %c0_31 = arith.constant 0 : index
    %c0_32 = arith.constant 0 : index
    %58 = vector.load %arg10[%c0_31, %c0_32] : memref<4x1xf32, #tpu.memory_space<vmem>>, vector<4x1xf32>
    %59 = vector.broadcast %58 : vector<4x1xf32> to vector<4x32xf32>
    %60 = arith.addf %57, %59 : vector<4x32xf32>
    %c0_33 = arith.constant 0 : index
    %c0_34 = arith.constant 0 : index
    %61 = vector.load %arg12[%c0_33, %c0_34] : memref<4x32xf32, #tpu.memory_space<vmem>>, vector<4x32xf32>
    tpu.vector_store %arg12[%c0_33, %c0_34], %60 {strides = array<i32>} : memref<4x32xf32, #tpu.memory_space<vmem>>, vector<4x32xf32>,
    return
  }
  func.func @transform_0(%arg0: i32) -> (i32, i32) {
    %c0_i32 = arith.constant 0 : i32
    %c0_i32_0 = arith.constant 0 : i32
    %c0_i32_1 = arith.constant 0 : i32
    return %c0_i32, %c0_i32_0 : i32, i32
  }
  func.func @transform_1(%arg0: i32) -> (i32, i32) {
    %c0_i32 = arith.constant 0 : i32
    %c0_i32_0 = arith.constant 0 : i32
    %c0_i32_1 = arith.constant 0 : i32
    return %c0_i32, %c0_i32_0 : i32, i32
  }
  func.func @transform_2(%arg0: i32) -> (i32, i32) {
    %c0_i32 = arith.constant 0 : i32
    %c0_i32_0 = arith.constant 0 : i32
    %c0_i32_1 = arith.constant 0 : i32
    return %c0_i32, %c0_i32_0 : i32, i32
  }
  func.func @transform_3(%arg0: i32) -> (i32, i32) {
    %c0_i32 = arith.constant 0 : i32
    %c0_i32_0 = arith.constant 0 : i32
    %c0_i32_1 = arith.constant 0 : i32
    return %c0_i32, %c0_i32_0 : i32, i32
  }
  func.func @transform_4(%arg0: i32) -> (i32, i32) {
    %c0_i32 = arith.constant 0 : i32
    %c0_i32_0 = arith.constant 0 : i32
    %c0_i32_1 = arith.constant 0 : i32
    return %c0_i32, %c0_i32_0 : i32, i32
  }
  func.func @transform_5(%arg0: i32) -> (i32, i32) {
    %c0_i32 = arith.constant 0 : i32
    %c0_i32_0 = arith.constant 0 : i32
    %c0_i32_1 = arith.constant 0 : i32
    return %c0_i32, %c0_i32_0 : i32, i32
  }
  func.func @transform_6(%arg0: i32) -> (i32, i32) {
    %c0_i32 = arith.constant 0 : i32
    %c0_i32_0 = arith.constant 0 : i32
    %c0_i32_1 = arith.constant 0 : i32
    return %c0_i32, %c0_i32_0 : i32, i32
  }
  func.func @transform_7(%arg0: i32) -> (i32, i32) {
    %c0_i32 = arith.constant 0 : i32
    %c0_i32_0 = arith.constant 0 : i32
    %c0_i32_1 = arith.constant 0 : i32
    return %c0_i32, %c0_i32_0 : i32, i32
  }
  func.func @transform_8(%arg0: i32) -> (i32, i32) {
    %c0_i32 = arith.constant 0 : i32
    %c0_i32_0 = arith.constant 0 : i32
    %c0_i32_1 = arith.constant 0 : i32
    return %c0_i32, %c0_i32_0 : i32, i32
  }
  func.func @transform_9(%arg0: i32) -> (i32, i32) {
    %c0_i32 = arith.constant 0 : i32
    %c0_i32_0 = arith.constant 0 : i32
    %c0_i32_1 = arith.constant 0 : i32
    return %c0_i32, %c0_i32_0 : i32, i32
  }
  func.func @transform_10(%arg0: i32) -> (i32, i32) {
    %c0_i32 = arith.constant 0 : i32
    %c0_i32_0 = arith.constant 0 : i32
    %c0_i32_1 = arith.constant 0 : i32
    return %c0_i32, %c0_i32_0 : i32, i32
  }
  func.func @transform_11(%arg0: i32) -> (i32, i32) {
    %c0_i32 = arith.constant 0 : i32
    %c0_i32_0 = arith.constant 0 : i32
    %c0_i32_1 = arith.constant 0 : i32
    return %c0_i32, %c0_i32_0 : i32, i32
  }
}

</mosaic_0001>

<llo_original>
// kernel: coordinate_attention.5
$region0: #{coordinate_attention.5}
  #allocation0 [shape = 'u32[]', space=smem, size = 0x4, offset = 0x4, fixed_abs, tag = 'smem constant byte address 0x4 - core index']
  #allocation1 [shape = 'u32[72,128]{1,0:T(1,128)}', space=vmem, size = 0x9000, scoped, tag = 'internal scratch']
  %s0 = inlined_call_operand.vmem [shape: f32[8,256], index: 0, kind: input, shape index: {}]
  %s1 = inlined_call_operand.vmem [shape: f32[8,16], index: 1, kind: input, shape index: {}]
  %s2 = inlined_call_operand.vmem [shape: f32[8,16], index: 2, kind: input, shape index: {}]
  %s3 = inlined_call_operand.vmem [shape: bf16[16,256], index: 3, kind: input, shape index: {}]
  %s4 = inlined_call_operand.vmem [shape: bf16[16,256], index: 4, kind: input, shape index: {}]
  %s5 = inlined_call_operand.vmem [shape: f32[8,256], index: 5, kind: output, shape index: {}]
  %s6 = sld [smem:[#allocation0]]
  $region30: #{coordinate_attention.5} parent=0
    _
  %s8 = ssub.s32 1, %s6
  %s9 = scalar_select 0, %s8, %s6
  // Predicated region
  $region2: #{coordinate_attention.5} parent=0 // pred_check
    _
  $region3: #{coordinate_attention.5} parent=0 // pred_check_branch
    %11 = sbr.rel (0) target = $region5
  $region4: #{coordinate_attention.5} parent=0 // pred_region
    _
  $region5: #{coordinate_attention.5} parent=0 // pred_fallthru
    _
  // Predicated region
  $region6: #{coordinate_attention.5} parent=0 // pred_check
    _
  $region7: #{coordinate_attention.5} parent=0 // pred_check_branch
    %13 = sbr.rel (0) target = $region9
  $region8: #{coordinate_attention.5} parent=0 // pred_region
    _
  $region9: #{coordinate_attention.5} parent=0 // pred_fallthru
    _
  // Predicated region
  $region10: #{coordinate_attention.5} parent=0 // pred_check
    _
  $region11: #{coordinate_attention.5} parent=0 // pred_check_branch
    %15 = sbr.rel (0) target = $region13
  $region12: #{coordinate_attention.5} parent=0 // pred_region
    _
  $region13: #{coordinate_attention.5} parent=0 // pred_fallthru
    _
  // Predicated region
  $region14: #{coordinate_attention.5} parent=0 // pred_check
    _
  $region15: #{coordinate_attention.5} parent=0 // pred_check_branch
    %17 = sbr.rel (0) target = $region17
  $region16: #{coordinate_attention.5} parent=0 // pred_region
    _
  $region17: #{coordinate_attention.5} parent=0 // pred_fallthru
    _
  // Predicated region
  $region18: #{coordinate_attention.5} parent=0 // pred_check
    _
  $region19: #{coordinate_attention.5} parent=0 // pred_check_branch
    %19 = sbr.rel (0) target = $region21
  $region20: #{coordinate_attention.5} parent=0 // pred_region
    _
  $region21: #{coordinate_attention.5} parent=0 // pred_fallthru
    _
  %v21 = vld [vmem:[%s1] sm:$0xff]
  %v22 = vld [vmem:[%s3] sm:$0xff]
  %v23 = vld [vmem:[%s3 + $0x8] sm:$0xff]
  %v24 = vpack.c.bf16 %v21, %v21
  %v25 = vunpack.c.l.bf16 %v24
  %v26 = vsub.f32 %v21, %v25
  %v27 = vpack.c.bf16 %v26, %v26
  %v30 = vunpack.c.l.b16 %v22
  %v31 = vunpack.c.h.b16 %v22
  %v32 = vunpack.c.l.b16 %v23
  %v33 = vunpack.c.h.b16 %v23
  %v34 = vpack.c.b16 %v32, %v30
  %v35 = vpack.c.b16 %v33, %v31
  %vm38 = vcmask 130048
  %v40 = vsel %vm38, %v27, 0
  %42 = vmatpush.bf16.msra.mxu0 0
  %43 = vmatpush.bf16.msra.mxu0 0
  %44 = vmatpush.bf16.msra.mxu0 0
  %45 = vmatpush.bf16.msra.mxu0 0
  %46 = vmatpush.bf16.msra.mxu0 0
  %47 = vmatpush.bf16.msra.mxu0 0
  %48 = vmatpush.bf16.msra.mxu0 0
  %49 = vmatpush.bf16.msra.mxu0 %v34
  %50 = vmatmul.bf16.gmra.mxu0 %v40
  %v51 = vpop.f32.mrf.mxu0
  %v52 = vadd.f32 0.0, %v51
  %v53 = vpop.f32.mrf.mxu0
  %54 = vdwg.mxu0
  %55 = vmatpush.bf16.msra.mxu0 0
  %56 = vmatpush.bf16.msra.mxu0 0
  %57 = vmatpush.bf16.msra.mxu0 0
  %58 = vmatpush.bf16.msra.mxu0 0
  %59 = vmatpush.bf16.msra.mxu0 0
  %60 = vmatpush.bf16.msra.mxu0 0
  %61 = vmatpush.bf16.msra.mxu0 0
  %62 = vmatpush.bf16.msra.mxu0 %v35
  %63 = vmatmul.bf16.gmra.mxu0 %v40
  %v64 = vpop.f32.mrf.mxu0
  %v65 = vadd.f32 0.0, %v64
  %v66 = vpop.f32.mrf.mxu0
  %67 = vdwg.mxu0
  %v69 = vsel %vm38, %v24, 0
  %71 = vmatpush.bf16.msra.mxu0 0
  %72 = vmatpush.bf16.msra.mxu0 0
  %73 = vmatpush.bf16.msra.mxu0 0
  %74 = vmatpush.bf16.msra.mxu0 0
  %75 = vmatpush.bf16.msra.mxu0 0
  %76 = vmatpush.bf16.msra.mxu0 0
  %77 = vmatpush.bf16.msra.mxu0 0
  %78 = vmatpush.bf16.msra.mxu0 %v34
  %79 = vmatmul.bf16.gmra.mxu0 %v69
  %v80 = vpop.f32.mrf.mxu0
  %v81 = vadd.f32 %v52, %v80
  %v82 = vpop.f32.mrf.mxu0
  %83 = vdwg.mxu0
  %84 = vmatpush.bf16.msra.mxu0 0
  %85 = vmatpush.bf16.msra.mxu0 0
  %86 = vmatpush.bf16.msra.mxu0 0
  %87 = vmatpush.bf16.msra.mxu0 0
  %88 = vmatpush.bf16.msra.mxu0 0
  %89 = vmatpush.bf16.msra.mxu0 0
  %90 = vmatpush.bf16.msra.mxu0 0
  %91 = vmatpush.bf16.msra.mxu0 %v35
  %92 = vmatmul.bf16.gmra.mxu0 %v69
  %v93 = vpop.f32.mrf.mxu0
  %v94 = vadd.f32 %v65, %v93
  %v95 = vpop.f32.mrf.mxu0
  %96 = vdwg.mxu0
  %v97 = vld [vmem:[%s2] sm:$0xff]
  %v98 = vld [vmem:[%s4] sm:$0xff]
  %v99 = vld [vmem:[%s4 + $0x8] sm:$0xff]
  %v100 = vpack.c.bf16 %v97, %v97
  %v101 = vunpack.c.l.bf16 %v100
  %v102 = vsub.f32 %v97, %v101
  %v103 = vpack.c.bf16 %v102, %v102
  %v106 = vunpack.c.l.b16 %v98
  %v107 = vunpack.c.h.b16 %v98
  %v108 = vunpack.c.l.b16 %v99
  %v109 = vunpack.c.h.b16 %v99
  %v110 = vpack.c.b16 %v108, %v106
  %v111 = vpack.c.b16 %v109, %v107
  %v115 = vsel %vm38, %v103, 0
  %117 = vmatpush.bf16.msra.mxu0 0
  %118 = vmatpush.bf16.msra.mxu0 0
  %119 = vmatpush.bf16.msra.mxu0 0
  %120 = vmatpush.bf16.msra.mxu0 0
  %121 = vmatpush.bf16.msra.mxu0 0
  %122 = vmatpush.bf16.msra.mxu0 0
  %123 = vmatpush.bf16.msra.mxu0 0
  %124 = vmatpush.bf16.msra.mxu0 %v110
  %125 = vmatmul.bf16.gmra.mxu0 %v115
  %v126 = vpop.f32.mrf.mxu0
  %v127 = vadd.f32 0.0, %v126
  %v128 = vpop.f32.mrf.mxu0
  %129 = vdwg.mxu0
  %130 = vmatpush.bf16.msra.mxu0 0
  %131 = vmatpush.bf16.msra.mxu0 0
  %132 = vmatpush.bf16.msra.mxu0 0
  %133 = vmatpush.bf16.msra.mxu0 0
  %134 = vmatpush.bf16.msra.mxu0 0
  %135 = vmatpush.bf16.msra.mxu0 0
  %136 = vmatpush.bf16.msra.mxu0 0
  %137 = vmatpush.bf16.msra.mxu0 %v111
  %138 = vmatmul.bf16.gmra.mxu0 %v115
  %v139 = vpop.f32.mrf.mxu0
  %v140 = vadd.f32 0.0, %v139
  %v141 = vpop.f32.mrf.mxu0
  %142 = vdwg.mxu0
  %v144 = vsel %vm38, %v100, 0
  %146 = vmatpush.bf16.msra.mxu0 0
  %147 = vmatpush.bf16.msra.mxu0 0
  %148 = vmatpush.bf16.msra.mxu0 0
  %149 = vmatpush.bf16.msra.mxu0 0
  %150 = vmatpush.bf16.msra.mxu0 0
  %151 = vmatpush.bf16.msra.mxu0 0
  %152 = vmatpush.bf16.msra.mxu0 0
  %153 = vmatpush.bf16.msra.mxu0 %v110
  %154 = vmatmul.bf16.gmra.mxu0 %v144
  %v155 = vpop.f32.mrf.mxu0
  %v156 = vadd.f32 %v127, %v155
  %v157 = vpop.f32.mrf.mxu0
  %158 = vdwg.mxu0
  %159 = vmatpush.bf16.msra.mxu0 0
  %160 = vmatpush.bf16.msra.mxu0 0
  %161 = vmatpush.bf16.msra.mxu0 0
  %162 = vmatpush.bf16.msra.mxu0 0
  %163 = vmatpush.bf16.msra.mxu0 0
  %164 = vmatpush.bf16.msra.mxu0 0
  %165 = vmatpush.bf16.msra.mxu0 0
  %166 = vmatpush.bf16.msra.mxu0 %v111
  %167 = vmatmul.bf16.gmra.mxu0 %v144
  %v168 = vpop.f32.mrf.mxu0
  %v169 = vadd.f32 %v140, %v168
  %v170 = vpop.f32.mrf.mxu0
  %171 = vdwg.mxu0
  %v172 = vld [vmem:[%s0] sm:$0xff]
  %v173 = vld [vmem:[%s0 + $0x8] sm:$0xff]
  %v174 = vmul.f32 %v81, %v156
  %v175 = vmul.f32 %v94, %v169
  %v176 = vmul.f32 %v172, %v174
  %v177 = vmul.f32 %v173, %v175
  %178 = vst [vmem:[%s5] sm:$0xff] %v176
  %179 = vst [vmem:[%s5 + $0x8] sm:$0xff] %v177
  // Predicated region
  $region22: #{coordinate_attention.5} parent=0 // pred_check
    _
  $region23: #{coordinate_attention.5} parent=0 // pred_check_branch
    %181 = sbr.rel (0) target = $region25
  $region24: #{coordinate_attention.5} parent=0 // pred_region
    _
  $region25: #{coordinate_attention.5} parent=0 // pred_fallthru
    _
  // Predicated region
  $region26: #{coordinate_attention.5} parent=0 // pred_check
    _
  $region27: #{coordinate_attention.5} parent=0 // pred_check_branch
    %183 = sbr.rel (0) target = $region29
  $region28: #{coordinate_attention.5} parent=0 // pred_region
    _
  $region29: #{coordinate_attention.5} parent=0 // pred_fallthru
    _

// kernel: coordinate_attention.3
$region0: #{coordinate_attention.3}
  #allocation0 [shape = 'u32[]', space=smem, size = 0x4, offset = 0x4, fixed_abs, tag = 'smem constant byte address 0x4 - core index']
  #allocation1 [shape = 'u32[72,128]{1,0:T(1,128)}', space=vmem, size = 0x9000, scoped, tag = 'internal scratch']
  %s0 = inlined_call_operand.vmem [shape: f32[8,256], index: 0, kind: input, shape index: {}]
  %s1 = inlined_call_operand.vmem [shape: bf16[256,32], index: 1, kind: input, shape index: {}]
  %s2 = inlined_call_operand.vmem [shape: f32[1,32], index: 2, kind: input, shape index: {}]
  %s3 = inlined_call_operand.vmem [shape: f32[8,32], index: 3, kind: output, shape index: {}]
  %s4 = sld [smem:[#allocation0]]
  $region30: #{coordinate_attention.3} parent=0
    _
  %s6 = ssub.s32 1, %s4
  %s7 = scalar_select 0, %s6, %s4
  // Predicated region
  $region2: #{coordinate_attention.3} parent=0 // pred_check
    _
  $region3: #{coordinate_attention.3} parent=0 // pred_check_branch
    %9 = sbr.rel (0) target = $region5
  $region4: #{coordinate_attention.3} parent=0 // pred_region
    _
  $region5: #{coordinate_attention.3} parent=0 // pred_fallthru
    _
  // Predicated region
  $region6: #{coordinate_attention.3} parent=0 // pred_check
    _
  $region7: #{coordinate_attention.3} parent=0 // pred_check_branch
    %11 = sbr.rel (0) target = $region9
  $region8: #{coordinate_attention.3} parent=0 // pred_region
    _
  $region9: #{coordinate_attention.3} parent=0 // pred_fallthru
    _
  // Predicated region
  $region10: #{coordinate_attention.3} parent=0 // pred_check
    _
  $region11: #{coordinate_attention.3} parent=0 // pred_check_branch
    %13 = sbr.rel (0) target = $region13
  $region12: #{coordinate_attention.3} parent=0 // pred_region
    _
  $region13: #{coordinate_attention.3} parent=0 // pred_fallthru
    _
  %p14 = scmp.eq.s32.totalorder 0, 0
  // Predicated region
  $region14: #{coordinate_attention.3} parent=0 // pred_check
    %p15 = pneg %p14
  $region15: #{coordinate_attention.3} parent=0 // pred_check_branch
    %17 = sbr.rel (%p15) target = $region17
  $region16: #{coordinate_attention.3} parent=0 // pred_region
    %vm18 = vcmask 261120
    %19 = vst.msk [vmem:[%s3] sm:$0xff] %vm18, 0.0
  $region17: #{coordinate_attention.3} parent=0 // pred_fallthru
    _
  %v20 = vld [vmem:[%s0] sm:$0xff]
  %v21 = vld [vmem:[%s0 + $0x8] sm:$0xff]
  %v22 = vld [vmem:[%s3] sm:$0xff]
  %v23 = vld [vmem:[%s1] sm:$0xf]
  %v24 = vld [vmem:[%s1 + $0x4] sm:$0xf]
  %v25 = vld [vmem:[%s1 + $0x8] sm:$0xf]
  %v26 = vld [vmem:[%s1 + $0xc] sm:$0xf]
  %v27 = vld [vmem:[%s1 + $0x10] sm:$0xf]
  %v28 = vld [vmem:[%s1 + $0x14] sm:$0xf]
  %v29 = vld [vmem:[%s1 + $0x18] sm:$0xf]
  %v30 = vld [vmem:[%s1 + $0x1c] sm:$0xf]
  %v31 = vld [vmem:[%s1 + $0x20] sm:$0xf]
  %v32 = vld [vmem:[%s1 + $0x24] sm:$0xf]
  %v33 = vld [vmem:[%s1 + $0x28] sm:$0xf]
  %v34 = vld [vmem:[%s1 + $0x2c] sm:$0xf]
  %v35 = vld [vmem:[%s1 + $0x30] sm:$0xf]
  %v36 = vld [vmem:[%s1 + $0x34] sm:$0xf]
  %v37 = vld [vmem:[%s1 + $0x38] sm:$0xf]
  %v38 = vld [vmem:[%s1 + $0x3c] sm:$0xf]
  %v39 = vld [vmem:[%s1 + $0x40] sm:$0xf]
  %v40 = vld [vmem:[%s1 + $0x44] sm:$0xf]
  %v41 = vld [vmem:[%s1 + $0x48] sm:$0xf]
  %v42 = vld [vmem:[%s1 + $0x4c] sm:$0xf]
  %v43 = vld [vmem:[%s1 + $0x50] sm:$0xf]
  %v44 = vld [vmem:[%s1 + $0x54] sm:$0xf]
  %v45 = vld [vmem:[%s1 + $0x58] sm:$0xf]
  %v46 = vld [vmem:[%s1 + $0x5c] sm:$0xf]
  %v47 = vld [vmem:[%s1 + $0x60] sm:$0xf]
  %v48 = vld [vmem:[%s1 + $0x64] sm:$0xf]
  %v49 = vld [vmem:[%s1 + $0x68] sm:$0xf]
  %v50 = vld [vmem:[%s1 + $0x6c] sm:$0xf]
  %v51 = vld [vmem:[%s1 + $0x70] sm:$0xf]
  %v52 = vld [vmem:[%s1 + $0x74] sm:$0xf]
  %v53 = vld [vmem:[%s1 + $0x78] sm:$0xf]
  %v54 = vld [vmem:[%s1 + $0x7c] sm:$0xf]
  %v55 = vpack.c.bf16 %v21, %v20
  %v56 = vunpack.c.l.bf16 %v55
  %v57 = vunpack.c.h.bf16 %v55
  %v58 = vsub.f32 %v20, %v56
  %v59 = vsub.f32 %v21, %v57
  %v60 = vpack.c.bf16 %v58, %v58
  %v61 = vpack.c.bf16 %v59, %v59
  %v94 = vunpack.c.l.b16 %v23
  %v95 = vunpack.c.l.b16 %v24
  %v96 = vunpack.c.l.b16 %v25
  %v97 = vunpack.c.l.b16 %v26
  %v98 = vunpack.c.l.b16 %v27
  %v99 = vunpack.c.l.b16 %v28
  %v100 = vunpack.c.l.b16 %v29
  %v101 = vunpack.c.l.b16 %v30
  %v102 = vunpack.c.l.b16 %v31
  %v103 = vunpack.c.l.b16 %v32
  %v104 = vunpack.c.l.b16 %v33
  %v105 = vunpack.c.l.b16 %v34
  %v106 = vunpack.c.l.b16 %v35
  %v107 = vunpack.c.l.b16 %v36
  %v108 = vunpack.c.l.b16 %v37
  %v109 = vunpack.c.l.b16 %v38
  %v110 = vunpack.c.l.b16 %v39
  %v111 = vunpack.c.l.b16 %v40
  %v112 = vunpack.c.l.b16 %v41
  %v113 = vunpack.c.l.b16 %v42
  %v114 = vunpack.c.l.b16 %v43
  %v115 = vunpack.c.l.b16 %v44
  %v116 = vunpack.c.l.b16 %v45
  %v117 = vunpack.c.l.b16 %v46
  %v118 = vunpack.c.l.b16 %v47
  %v119 = vunpack.c.l.b16 %v48
  %v120 = vunpack.c.l.b16 %v49
  %v121 = vunpack.c.l.b16 %v50
  %v122 = vunpack.c.l.b16 %v51
  %v123 = vunpack.c.l.b16 %v52
  %v124 = vunpack.c.l.b16 %v53
  %v125 = vunpack.c.l.b16 %v54
  %v126 = vpack.c.b16 %v95, %v94
  %v127 = vpack.c.b16 %v97, %v96
  %v128 = vpack.c.b16 %v99, %v98
  %v129 = vpack.c.b16 %v101, %v100
  %v130 = vpack.c.b16 %v103, %v102
  %v131 = vpack.c.b16 %v105, %v104
  %v132 = vpack.c.b16 %v107, %v106
  %v133 = vpack.c.b16 %v109, %v108
  %v134 = vpack.c.b16 %v111, %v110
  %v135 = vpack.c.b16 %v113, %v112
  %v136 = vpack.c.b16 %v115, %v114
  %v137 = vpack.c.b16 %v117, %v116
  %v138 = vpack.c.b16 %v119, %v118
  %v139 = vpack.c.b16 %v121, %v120
  %v140 = vpack.c.b16 %v123, %v122
  %v141 = vpack.c.b16 %v125, %v124
  %158 = vmatpush.bf16.msra.mxu0 %v133
  %159 = vmatpush.bf16.msra.mxu0 %v132
  %160 = vmatpush.bf16.msra.mxu0 %v131
  %161 = vmatpush.bf16.msra.mxu0 %v130
  %162 = vmatpush.bf16.msra.mxu0 %v129
  %163 = vmatpush.bf16.msra.mxu0 %v128
  %164 = vmatpush.bf16.msra.mxu0 %v127
  %165 = vmatpush.bf16.msra.mxu0 %v126
  %166 = vmatmul.bf16.gmra.mxu0 %v60
  %v167 = vpop.f32.mrf.mxu0
  %v168 = vadd.f32 0.0, %v167
  %v169 = vpop.f32.mrf.mxu0
  %170 = vdwg.mxu0
  %171 = vmatpush.bf16.msra.mxu0 %v141
  %172 = vmatpush.bf16.msra.mxu0 %v140
  %173 = vmatpush.bf16.msra.mxu0 %v139
  %174 = vmatpush.bf16.msra.mxu0 %v138
  %175 = vmatpush.bf16.msra.mxu0 %v137
  %176 = vmatpush.bf16.msra.mxu0 %v136
  %177 = vmatpush.bf16.msra.mxu0 %v135
  %178 = vmatpush.bf16.msra.mxu0 %v134
  %179 = vmatmul.bf16.gmra.mxu0 %v61
  %v180 = vpop.f32.mrf.mxu0
  %v181 = vadd.f32 %v168, %v180
  %v182 = vpop.f32.mrf.mxu0
  %183 = vdwg.mxu0
  %v185 = vunpack.c.l.b16 %v55
  %v186 = vunpack.c.h.b16 %v55
  %v187 = vpack.c.b16 %v185, %v185
  %v188 = vpack.c.b16 %v186, %v186
  %191 = vmatpush.bf16.msra.mxu0 %v133
  %192 = vmatpush.bf16.msra.mxu0 %v132
  %193 = vmatpush.bf16.msra.mxu0 %v131
  %194 = vmatpush.bf16.msra.mxu0 %v130
  %195 = vmatpush.bf16.msra.mxu0 %v129
  %196 = vmatpush.bf16.msra.mxu0 %v128
  %197 = vmatpush.bf16.msra.mxu0 %v127
  %198 = vmatpush.bf16.msra.mxu0 %v126
  %199 = vmatmul.bf16.gmra.mxu0 %v187
  %v200 = vpop.f32.mrf.mxu0
  %v201 = vadd.f32 %v181, %v200
  %v202 = vpop.f32.mrf.mxu0
  %203 = vdwg.mxu0
  %204 = vmatpush.bf16.msra.mxu0 %v141
  %205 = vmatpush.bf16.msra.mxu0 %v140
  %206 = vmatpush.bf16.msra.mxu0 %v139
  %207 = vmatpush.bf16.msra.mxu0 %v138
  %208 = vmatpush.bf16.msra.mxu0 %v137
  %209 = vmatpush.bf16.msra.mxu0 %v136
  %210 = vmatpush.bf16.msra.mxu0 %v135
  %211 = vmatpush.bf16.msra.mxu0 %v134
  %212 = vmatmul.bf16.gmra.mxu0 %v188
  %v213 = vpop.f32.mrf.mxu0
  %v214 = vadd.f32 %v201, %v213
  %v215 = vpop.f32.mrf.mxu0
  %216 = vdwg.mxu0
  %v217 = vadd.f32 %v22, %v214
  %vm218 = vcmask 261120
  %219 = vst.msk [vmem:[%s3] sm:$0xff] %vm218, %v217
  // Predicated region
  $region18: #{coordinate_attention.3} parent=0 // pred_check
    %p220 = pneg %p14
  $region19: #{coordinate_attention.3} parent=0 // pred_check_branch
    %222 = sbr.rel (%p220) target = $region21
  $region20: #{coordinate_attention.3} parent=0 // pred_region
    %v223 = vld [vmem:[%s3] sm:$0xff]
    %v224 = vld [vmem:[%s2] sm:$0x1]
    %v226 = vperm.slane %v224, 0
    %v228 = vmul.f32 %v223, %v226
    %229 = vst.msk [vmem:[%s3] sm:$0xff] %vm218, %v228
  $region21: #{coordinate_attention.3} parent=0 // pred_fallthru
    _
  // Predicated region
  $region22: #{coordinate_attention.3} parent=0 // pred_check
    _
  $region23: #{coordinate_attention.3} parent=0 // pred_check_branch
    %231 = sbr.rel (0) target = $region25
  $region24: #{coordinate_attention.3} parent=0 // pred_region
    _
  $region25: #{coordinate_attention.3} parent=0 // pred_fallthru
    _
  // Predicated region
  $region26: #{coordinate_attention.3} parent=0 // pred_check
    _
  $region27: #{coordinate_attention.3} parent=0 // pred_check_branch
    %233 = sbr.rel (0) target = $region29
  $region28: #{coordinate_attention.3} parent=0 // pred_region
    _
  $region29: #{coordinate_attention.3} parent=0 // pred_fallthru
    _

// kernel: coordinate_attention.4
$region0: #{coordinate_attention.4}
  #allocation0 [shape = 'u32[]', space=smem, size = 0x4, offset = 0x4, fixed_abs, tag = 'smem constant byte address 0x4 - core index']
  #allocation1 [shape = 'u32[72,128]{1,0:T(1,128)}', space=vmem, size = 0x9000, scoped, tag = 'internal scratch']
  %s0 = inlined_call_operand.vmem [shape: f32[4,32], index: 0, kind: input, shape index: {}]
  %s1 = inlined_call_operand.vmem [shape: f32[4,32], index: 1, kind: input, shape index: {}]
  %s2 = inlined_call_operand.vmem [shape: f32[8,4], index: 2, kind: input, shape index: {}]
  %s3 = inlined_call_operand.vmem [shape: f32[8,1], index: 3, kind: input, shape index: {}]
  %s4 = inlined_call_operand.vmem [shape: f32[8,1], index: 4, kind: input, shape index: {}]
  %s5 = inlined_call_operand.vmem [shape: f32[8,1], index: 5, kind: input, shape index: {}]
  %s6 = inlined_call_operand.vmem [shape: f32[4,8], index: 6, kind: input, shape index: {}]
  %s7 = inlined_call_operand.vmem [shape: f32[4,1], index: 7, kind: input, shape index: {}]
  %s8 = inlined_call_operand.vmem [shape: f32[4,8], index: 8, kind: input, shape index: {}]
  %s9 = inlined_call_operand.vmem [shape: f32[4,1], index: 9, kind: input, shape index: {}]
  %s10 = inlined_call_operand.vmem [shape: f32[4,32], index: 10, kind: output, shape index: {0}]
  %s11 = inlined_call_operand.vmem [shape: f32[4,32], index: 11, kind: output, shape index: {1}]
  %12 = xla_tuple %s10, %s11
  %s13 = sld [smem:[#allocation0]]
  $region58: #{coordinate_attention.4} parent=0
    _
  %s15 = ssub.s32 1, %s13
  %s16 = scalar_select 0, %s15, %s13
  // Predicated region
  $region2: #{coordinate_attention.4} parent=0 // pred_check
    _
  $region3: #{coordinate_attention.4} parent=0 // pred_check_branch
    %18 = sbr.rel (0) target = $region5
  $region4: #{coordinate_attention.4} parent=0 // pred_region
    _
  $region5: #{coordinate_attention.4} parent=0 // pred_fallthru
    _
  // Predicated region
  $region6: #{coordinate_attention.4} parent=0 // pred_check
    _
  $region7: #{coordinate_attention.4} parent=0 // pred_check_branch
    %20 = sbr.rel (0) target = $region9
  $region8: #{coordinate_attention.4} parent=0 // pred_region
    _
  $region9: #{coordinate_attention.4} parent=0 // pred_fallthru
    _
  // Predicated region
  $region10: #{coordinate_attention.4} parent=0 // pred_check
    _
  $region11: #{coordinate_attention.4} parent=0 // pred_check_branch
    %22 = sbr.rel (0) target = $region13
  $region12: #{coordinate_attention.4} parent=0 // pred_region
    _
  $region13: #{coordinate_attention.4} parent=0 // pred_fallthru
    _
  // Predicated region
  $region14: #{coordinate_attention.4} parent=0 // pred_check
    _
  $region15: #{coordinate_attention.4} parent=0 // pred_check_branch
    %24 = sbr.rel (0) target = $region17
  $region16: #{coordinate_attention.4} parent=0 // pred_region
    _
  $region17: #{coordinate_attention.4} parent=0 // pred_fallthru
    _
  // Predicated region
  $region18: #{coordinate_attention.4} parent=0 // pred_check
    _
  $region19: #{coordinate_attention.4} parent=0 // pred_check_branch
    %26 = sbr.rel (0) target = $region21
  $region20: #{coordinate_attention.4} parent=0 // pred_region
    _
  $region21: #{coordinate_attention.4} parent=0 // pred_fallthru
    _
  // Predicated region
  $region22: #{coordinate_attention.4} parent=0 // pred_check
    _
  $region23: #{coordinate_attention.4} parent=0 // pred_check_branch
    %28 = sbr.rel (0) target = $region25
  $region24: #{coordinate_attention.4} parent=0 // pred_region
    _
  $region25: #{coordinate_attention.4} parent=0 // pred_fallthru
    _
  // Predicated region
  $region26: #{coordinate_attention.4} parent=0 // pred_check
    _
  $region27: #{coordinate_attention.4} parent=0 // pred_check_branch
    %30 = sbr.rel (0) target = $region29
  $region28: #{coordinate_attention.4} parent=0 // pred_region
    _
  $region29: #{coordinate_attention.4} parent=0 // pred_fallthru
    _
  // Predicated region
  $region30: #{coordinate_attention.4} parent=0 // pred_check
    _
  $region31: #{coordinate_attention.4} parent=0 // pred_check_branch
    %32 = sbr.rel (0) target = $region33
  $region32: #{coordinate_attention.4} parent=0 // pred_region
    _
  $region33: #{coordinate_attention.4} parent=0 // pred_fallthru
    _
  // Predicated region
  $region34: #{coordinate_attention.4} parent=0 // pred_check
    _
  $region35: #{coordinate_attention.4} parent=0 // pred_check_branch
    %34 = sbr.rel (0) target = $region37
  $region36: #{coordinate_attention.4} parent=0 // pred_region
    _
  $region37: #{coordinate_attention.4} parent=0 // pred_fallthru
    _
  // Predicated region
  $region38: #{coordinate_attention.4} parent=0 // pred_check
    _
  $region39: #{coordinate_attention.4} parent=0 // pred_check_branch
    %36 = sbr.rel (0) target = $region41
  $region40: #{coordinate_attention.4} parent=0 // pred_region
    _
  $region41: #{coordinate_attention.4} parent=0 // pred_fallthru
    _
  %v37 = vld [vmem:[%s2] sm:$0xff]
  %v38 = vld [vmem:[%s3] sm:$0xff]
  %v39 = vld [vmem:[%s0] sm:$0xf]
  %41 = vset.pattern.permute.xlu0 0
  %42 = vperm.xlu0 %41, %v38
  %v43 = vpop.permute.xlu0 %42
  %vm45 = vcmask 31744
  %v47 = vsel %vm45, %v37, 0
  %vm49 = vcmask 1043456
  %v51 = vsel %vm49, %v39, 0
  %53 = vmatpush.msra.mxu0 0.0
  %54 = vmatpush.msra.mxu0 0.0
  %55 = vmatpush.msra.mxu0 0.0
  %56 = vmatpush.msra.mxu0 0.0
  %57 = vmatpush.msra.mxu0 0.0
  %58 = vmatpush.msra.mxu0 0.0
  %59 = vmatpush.msra.mxu0 0.0
  %60 = vmatpush.msra.mxu0 0.0
  %61 = vmatpush.msra.mxu0 0.0
  %62 = vmatpush.msra.mxu0 0.0
  %63 = vmatpush.msra.mxu0 0.0
  %64 = vmatpush.msra.mxu0 0.0
  %65 = vmatpush.msra.mxu0 0.0
  %66 = vmatpush.msra.mxu0 0.0
  %67 = vmatpush.msra.mxu0 0.0
  %v68 = vand.u32 %v51, 4294901760
  %69 = vmatpush.msra.mxu0 %v68
  %v70 = vand.u32 %v47, 4294901760
  %v71 = vsub.f32 %v47, %v70
  %v72 = vand.u32 %v71, 4294901760
  %v73 = vsub.f32 %v71, %v72
  %v74 = vand.u32 %v73, 4294901760
  %75 = vmatmul.f32.gmra.mxu0 %v74
  %v76 = vpop.f32.mrf.mxu0
  %v77 = vadd.f32 %v43, %v76
  %78 = vdwg.mxu0
  %79 = vmatpush.msra.mxu0 0.0
  %80 = vmatpush.msra.mxu0 0.0
  %81 = vmatpush.msra.mxu0 0.0
  %82 = vmatpush.msra.mxu0 0.0
  %83 = vmatpush.msra.mxu0 0.0
  %84 = vmatpush.msra.mxu0 0.0
  %85 = vmatpush.msra.mxu0 0.0
  %86 = vmatpush.msra.mxu0 0.0
  %87 = vmatpush.msra.mxu0 0.0
  %88 = vmatpush.msra.mxu0 0.0
  %89 = vmatpush.msra.mxu0 0.0
  %90 = vmatpush.msra.mxu0 0.0
  %91 = vmatpush.msra.mxu0 0.0
  %92 = vmatpush.msra.mxu0 0.0
  %93 = vmatpush.msra.mxu0 0.0
  %v94 = vand.u32 %v51, 4294901760
  %v95 = vsub.f32 %v51, %v94
  %v96 = vand.u32 %v95, 4294901760
  %v97 = vsub.f32 %v95, %v96
  %v98 = vand.u32 %v97, 4294901760
  %99 = vmatpush.msra.mxu0 %v98
  %v100 = vand.u32 %v47, 4294901760
  %101 = vmatmul.f32.gmra.mxu0 %v100
  %v102 = vpop.f32.mrf.mxu0
  %v103 = vadd.f32 %v77, %v102
  %104 = vdwg.mxu0
  %105 = vmatpush.msra.mxu0 0.0
  %106 = vmatpush.msra.mxu0 0.0
  %107 = vmatpush.msra.mxu0 0.0
  %108 = vmatpush.msra.mxu0 0.0
  %109 = vmatpush.msra.mxu0 0.0
  %110 = vmatpush.msra.mxu0 0.0
  %111 = vmatpush.msra.mxu0 0.0
  %112 = vmatpush.msra.mxu0 0.0
  %113 = vmatpush.msra.mxu0 0.0
  %114 = vmatpush.msra.mxu0 0.0
  %115 = vmatpush.msra.mxu0 0.0
  %116 = vmatpush.msra.mxu0 0.0
  %117 = vmatpush.msra.mxu0 0.0
  %118 = vmatpush.msra.mxu0 0.0
  %119 = vmatpush.msra.mxu0 0.0
  %v120 = vand.u32 %v51, 4294901760
  %v121 = vsub.f32 %v51, %v120
  %122 = vmatpush.msra.mxu0 %v121
  %v123 = vand.u32 %v47, 4294901760
  %v124 = vsub.f32 %v47, %v123
  %125 = vmatmul.f32.gmra.mxu0 %v124
  %v126 = vpop.f32.mrf.mxu0
  %v127 = vadd.f32 %v103, %v126
  %128 = vdwg.mxu0
  %129 = vmatpush.msra.mxu0 0.0
  %130 = vmatpush.msra.mxu0 0.0
  %131 = vmatpush.msra.mxu0 0.0
  %132 = vmatpush.msra.mxu0 0.0
  %133 = vmatpush.msra.mxu0 0.0
  %134 = vmatpush.msra.mxu0 0.0
  %135 = vmatpush.msra.mxu0 0.0
  %136 = vmatpush.msra.mxu0 0.0
  %137 = vmatpush.msra.mxu0 0.0
  %138 = vmatpush.msra.mxu0 0.0
  %139 = vmatpush.msra.mxu0 0.0
  %140 = vmatpush.msra.mxu0 0.0
  %141 = vmatpush.msra.mxu0 0.0
  %142 = vmatpush.msra.mxu0 0.0
  %143 = vmatpush.msra.mxu0 0.0
  %v144 = vand.u32 %v51, 4294901760
  %145 = vmatpush.msra.mxu0 %v144
  %v146 = vand.u32 %v47, 4294901760
  %v147 = vsub.f32 %v47, %v146
  %v148 = vand.u32 %v147, 4294901760
  %149 = vmatmul.f32.gmra.mxu0 %v148
  %v150 = vpop.f32.mrf.mxu0
  %v151 = vadd.f32 %v127, %v150
  %152 = vdwg.mxu0
  %153 = vmatpush.msra.mxu0 0.0
  %154 = vmatpush.msra.mxu0 0.0
  %155 = vmatpush.msra.mxu0 0.0
  %156 = vmatpush.msra.mxu0 0.0
  %157 = vmatpush.msra.mxu0 0.0
  %158 = vmatpush.msra.mxu0 0.0
  %159 = vmatpush.msra.mxu0 0.0
  %160 = vmatpush.msra.mxu0 0.0
  %161 = vmatpush.msra.mxu0 0.0
  %162 = vmatpush.msra.mxu0 0.0
  %163 = vmatpush.msra.mxu0 0.0
  %164 = vmatpush.msra.mxu0 0.0
  %165 = vmatpush.msra.mxu0 0.0
  %166 = vmatpush.msra.mxu0 0.0
  %167 = vmatpush.msra.mxu0 0.0
  %v168 = vand.u32 %v51, 4294901760
  %v169 = vsub.f32 %v51, %v168
  %v170 = vand.u32 %v169, 4294901760
  %171 = vmatpush.msra.mxu0 %v170
  %v172 = vand.u32 %v47, 4294901760
  %173 = vmatmul.f32.gmra.mxu0 %v172
  %v174 = vpop.f32.mrf.mxu0
  %v175 = vadd.f32 %v151, %v174
  %176 = vdwg.mxu0
  %177 = vmatpush.msra.mxu0 0.0
  %178 = vmatpush.msra.mxu0 0.0
  %179 = vmatpush.msra.mxu0 0.0
  %180 = vmatpush.msra.mxu0 0.0
  %181 = vmatpush.msra.mxu0 0.0
  %182 = vmatpush.msra.mxu0 0.0
  %183 = vmatpush.msra.mxu0 0.0
  %184 = vmatpush.msra.mxu0 0.0
  %185 = vmatpush.msra.mxu0 0.0
  %186 = vmatpush.msra.mxu0 0.0
  %187 = vmatpush.msra.mxu0 0.0
  %188 = vmatpush.msra.mxu0 0.0
  %189 = vmatpush.msra.mxu0 0.0
  %190 = vmatpush.msra.mxu0 0.0
  %191 = vmatpush.msra.mxu0 0.0
  %v192 = vand.u32 %v51, 4294901760
  %193 = vmatpush.msra.mxu0 %v192
  %v194 = vand.u32 %v47, 4294901760
  %195 = vmatmul.f32.gmra.mxu0 %v194
  %v196 = vpop.f32.mrf.mxu0
  %v197 = vadd.f32 %v175, %v196
  %198 = vdwg.mxu0
  %v199 = vld [vmem:[%s1] sm:$0xf]
  %v201 = vsel %vm49, %v199, 0
  %203 = vmatpush.msra.mxu0 0.0
  %204 = vmatpush.msra.mxu0 0.0
  %205 = vmatpush.msra.mxu0 0.0
  %206 = vmatpush.msra.mxu0 0.0
  %207 = vmatpush.msra.mxu0 0.0
  %208 = vmatpush.msra.mxu0 0.0
  %209 = vmatpush.msra.mxu0 0.0
  %210 = vmatpush.msra.mxu0 0.0
  %211 = vmatpush.msra.mxu0 0.0
  %212 = vmatpush.msra.mxu0 0.0
  %213 = vmatpush.msra.mxu0 0.0
  %214 = vmatpush.msra.mxu0 0.0
  %215 = vmatpush.msra.mxu0 0.0
  %216 = vmatpush.msra.mxu0 0.0
  %217 = vmatpush.msra.mxu0 0.0
  %v218 = vand.u32 %v201, 4294901760
  %219 = vmatpush.msra.mxu0 %v218
  %v220 = vand.u32 %v47, 4294901760
  %v221 = vsub.f32 %v47, %v220
  %v222 = vand.u32 %v221, 4294901760
  %v223 = vsub.f32 %v221, %v222
  %v224 = vand.u32 %v223, 4294901760
  %225 = vmatmul.f32.gmra.mxu0 %v224
  %v226 = vpop.f32.mrf.mxu0
  %v227 = vadd.f32 %v43, %v226
  %228 = vdwg.mxu0
  %229 = vmatpush.msra.mxu0 0.0
  %230 = vmatpush.msra.mxu0 0.0
  %231 = vmatpush.msra.mxu0 0.0
  %232 = vmatpush.msra.mxu0 0.0
  %233 = vmatpush.msra.mxu0 0.0
  %234 = vmatpush.msra.mxu0 0.0
  %235 = vmatpush.msra.mxu0 0.0
  %236 = vmatpush.msra.mxu0 0.0
  %237 = vmatpush.msra.mxu0 0.0
  %238 = vmatpush.msra.mxu0 0.0
  %239 = vmatpush.msra.mxu0 0.0
  %240 = vmatpush.msra.mxu0 0.0
  %241 = vmatpush.msra.mxu0 0.0
  %242 = vmatpush.msra.mxu0 0.0
  %243 = vmatpush.msra.mxu0 0.0
  %v244 = vand.u32 %v201, 4294901760
  %v245 = vsub.f32 %v201, %v244
  %v246 = vand.u32 %v245, 4294901760
  %v247 = vsub.f32 %v245, %v246
  %v248 = vand.u32 %v247, 4294901760
  %249 = vmatpush.msra.mxu0 %v248
  %v250 = vand.u32 %v47, 4294901760
  %251 = vmatmul.f32.gmra.mxu0 %v250
  %v252 = vpop.f32.mrf.mxu0
  %v253 = vadd.f32 %v227, %v252
  %254 = vdwg.mxu0
  %255 = vmatpush.msra.mxu0 0.0
  %256 = vmatpush.msra.mxu0 0.0
  %257 = vmatpush.msra.mxu0 0.0
  %258 = vmatpush.msra.mxu0 0.0
  %259 = vmatpush.msra.mxu0 0.0
  %260 = vmatpush.msra.mxu0 0.0
  %261 = vmatpush.msra.mxu0 0.0
  %262 = vmatpush.msra.mxu0 0.0
  %263 = vmatpush.msra.mxu0 0.0
  %264 = vmatpush.msra.mxu0 0.0
  %265 = vmatpush.msra.mxu0 0.0
  %266 = vmatpush.msra.mxu0 0.0
  %267 = vmatpush.msra.mxu0 0.0
  %268 = vmatpush.msra.mxu0 0.0
  %269 = vmatpush.msra.mxu0 0.0
  %v270 = vand.u32 %v201, 4294901760
  %v271 = vsub.f32 %v201, %v270
  %272 = vmatpush.msra.mxu0 %v271
  %v273 = vand.u32 %v47, 4294901760
  %v274 = vsub.f32 %v47, %v273
  %275 = vmatmul.f32.gmra.mxu0 %v274
  %v276 = vpop.f32.mrf.mxu0
  %v277 = vadd.f32 %v253, %v276
  %278 = vdwg.mxu0
  %279 = vmatpush.msra.mxu0 0.0
  %280 = vmatpush.msra.mxu0 0.0
  %281 = vmatpush.msra.mxu0 0.0
  %282 = vmatpush.msra.mxu0 0.0
  %283 = vmatpush.msra.mxu0 0.0
  %284 = vmatpush.msra.mxu0 0.0
  %285 = vmatpush.msra.mxu0 0.0
  %286 = vmatpush.msra.mxu0 0.0
  %287 = vmatpush.msra.mxu0 0.0
  %288 = vmatpush.msra.mxu0 0.0
  %289 = vmatpush.msra.mxu0 0.0
  %290 = vmatpush.msra.mxu0 0.0
  %291 = vmatpush.msra.mxu0 0.0
  %292 = vmatpush.msra.mxu0 0.0
  %293 = vmatpush.msra.mxu0 0.0
  %v294 = vand.u32 %v201, 4294901760
  %295 = vmatpush.msra.mxu0 %v294
  %v296 = vand.u32 %v47, 4294901760
  %v297 = vsub.f32 %v47, %v296
  %v298 = vand.u32 %v297, 4294901760
  %299 = vmatmul.f32.gmra.mxu0 %v298
  %v300 = vpop.f32.mrf.mxu0
  %v301 = vadd.f32 %v277, %v300
  %302 = vdwg.mxu0
  %303 = vmatpush.msra.mxu0 0.0
  %304 = vmatpush.msra.mxu0 0.0
  %305 = vmatpush.msra.mxu0 0.0
  %306 = vmatpush.msra.mxu0 0.0
  %307 = vmatpush.msra.mxu0 0.0
  %308 = vmatpush.msra.mxu0 0.0
  %309 = vmatpush.msra.mxu0 0.0
  %310 = vmatpush.msra.mxu0 0.0
  %311 = vmatpush.msra.mxu0 0.0
  %312 = vmatpush.msra.mxu0 0.0
  %313 = vmatpush.msra.mxu0 0.0
  %314 = vmatpush.msra.mxu0 0.0
  %315 = vmatpush.msra.mxu0 0.0
  %316 = vmatpush.msra.mxu0 0.0
  %317 = vmatpush.msra.mxu0 0.0
  %v318 = vand.u32 %v201, 4294901760
  %v319 = vsub.f32 %v201, %v318
  %v320 = vand.u32 %v319, 4294901760
  %321 = vmatpush.msra.mxu0 %v320
  %v322 = vand.u32 %v47, 4294901760
  %323 = vmatmul.f32.gmra.mxu0 %v322
  %v324 = vpop.f32.mrf.mxu0
  %v325 = vadd.f32 %v301, %v324
  %326 = vdwg.mxu0
  %327 = vmatpush.msra.mxu0 0.0
  %328 = vmatpush.msra.mxu0 0.0
  %329 = vmatpush.msra.mxu0 0.0
  %330 = vmatpush.msra.mxu0 0.0
  %331 = vmatpush.msra.mxu0 0.0
  %332 = vmatpush.msra.mxu0 0.0
  %333 = vmatpush.msra.mxu0 0.0
  %334 = vmatpush.msra.mxu0 0.0
  %335 = vmatpush.msra.mxu0 0.0
  %336 = vmatpush.msra.mxu0 0.0
  %337 = vmatpush.msra.mxu0 0.0
  %338 = vmatpush.msra.mxu0 0.0
  %339 = vmatpush.msra.mxu0 0.0
  %340 = vmatpush.msra.mxu0 0.0
  %341 = vmatpush.msra.mxu0 0.0
  %v342 = vand.u32 %v201, 4294901760
  %343 = vmatpush.msra.mxu0 %v342
  %v344 = vand.u32 %v47, 4294901760
  %345 = vmatmul.f32.gmra.mxu0 %v344
  %v346 = vpop.f32.mrf.mxu0
  %v347 = vadd.f32 %v325, %v346
  %348 = vdwg.mxu0
  %vm349 = vcmask 261120
  %v350 = vsel %vm349, %v197, 0.0
  %351 = vadd.xlane.f32.xlu0 %v350
  %v352 = vpop.xlane.xlu0 %351
  %v353 = vsel %vm349, %v347, 0.0
  %354 = vadd.xlane.f32.xlu0 %v353
  %v355 = vpop.xlane.xlu0 %354
  %v356 = vadd.f32 %v352, %v355
  %v357 = vrcp.pop 64.0
  %v358 = vmul.f32 64.0, %v357
  %v359 = vsub.f32 1.0, %v358
  %v360 = vmul.f32 %v357, %v359
  %v361 = vadd.f32 %v357, %v360
  %vm362 = vweird.f32 %v357
  %v363 = vsel %vm362, %v357, %v361
  %v364 = vmul.f32 %v356, %v363
  %v365 = vsub.f32 %v197, %v364
  %v366 = vsub.f32 %v347, %v364
  %v367 = vmul.f32 %v365, %v365
  %v368 = vsel %vm349, %v367, 0.0
  %369 = vadd.xlane.f32.xlu0 %v368
  %v370 = vpop.xlane.xlu0 %369
  %v371 = vmul.f32 %v366, %v366
  %v372 = vsel %vm349, %v371, 0.0
  %373 = vadd.xlane.f32.xlu0 %v372
  %v374 = vpop.xlane.xlu0 %373
  %v375 = vadd.f32 %v370, %v374
  %v376 = vmul.f32 %v375, %v363
  %v377 = vld [vmem:[%s4] sm:$0xff]
  %v378 = vadd.f32 %v376, 1e-05
  %v379 = vrsqrt.pop %v378
  %v380 = vmul.f32 %v379, %v378
  %v381 = vmul.f32 %v380, %v379
  %v382 = vmul.f32 0.5, %v381
  %v383 = vsub.f32 1.5, %v382
  %v384 = vmul.f32 %v379, %v383
  %vm385 = vweird.f32 %v378
  %vm386 = vweird.f32 %v379
  %vm387 = vmor %vm385, %vm386
  %v388 = vsel %vm387, %v379, %v384
  %v389 = vmul.f32 %v377, %v388
  %v390 = vld [vmem:[%s5] sm:$0xff]
  %v391 = vmul.f32 %v364, %v389
  %v392 = vsub.f32 %v390, %v391
  %394 = vset.pattern.permute.xlu0 0
  %395 = vperm.xlu0 %394, %v389
  %v396 = vpop.permute.xlu0 %395
  %v398 = vmul.f32 %v197, %v396
  %400 = vset.pattern.permute.xlu0 0
  %401 = vperm.xlu0 %400, %v392
  %v402 = vpop.permute.xlu0 %401
  %v404 = vadd.f32 %v398, %v402
  %v405 = vmax.f32 %v404, 0.0
  %v406 = vmul.f32 %v347, %v396
  %v407 = vadd.f32 %v406, %v402
  %v408 = vmax.f32 %v407, 0.0
  %v409 = vld [vmem:[%s6] sm:$0xf]
  %v410 = vld [vmem:[%s7] sm:$0xf]
  %412 = vset.pattern.permute.xlu0 0
  %413 = vperm.xlu0 %412, %v410
  %v414 = vpop.permute.xlu0 %413
  %vm416 = vcmask 64512
  %v418 = vsel %vm416, %v409, 0
  %420 = vmatpush.msra.mxu0 0.0
  %421 = vmatpush.msra.mxu0 0.0
  %422 = vmatpush.msra.mxu0 0.0
  %423 = vmatpush.msra.mxu0 0.0
  %424 = vmatpush.msra.mxu0 0.0
  %425 = vmatpush.msra.mxu0 0.0
  %426 = vmatpush.msra.mxu0 0.0
  %427 = vmatpush.msra.mxu0 0.0
  %428 = vmatpush.msra.mxu0 0.0
  %429 = vmatpush.msra.mxu0 0.0
  %430 = vmatpush.msra.mxu0 0.0
  %431 = vmatpush.msra.mxu0 0.0
  %432 = vmatpush.msra.mxu0 0.0
  %433 = vmatpush.msra.mxu0 0.0
  %434 = vmatpush.msra.mxu0 0.0
  %v435 = vand.u32 %v405, 4294901760
  %436 = vmatpush.msra.mxu0 %v435
  %v437 = vand.u32 %v418, 4294901760
  %v438 = vsub.f32 %v418, %v437
  %v439 = vand.u32 %v438, 4294901760
  %v440 = vsub.f32 %v438, %v439
  %v441 = vand.u32 %v440, 4294901760
  %442 = vmatmul.f32.gmra.mxu0 %v441
  %v443 = vpop.f32.mrf.mxu0
  %v444 = vadd.f32 %v414, %v443
  %445 = vdwg.mxu0
  %446 = vmatpush.msra.mxu0 0.0
  %447 = vmatpush.msra.mxu0 0.0
  %448 = vmatpush.msra.mxu0 0.0
  %449 = vmatpush.msra.mxu0 0.0
  %450 = vmatpush.msra.mxu0 0.0
  %451 = vmatpush.msra.mxu0 0.0
  %452 = vmatpush.msra.mxu0 0.0
  %453 = vmatpush.msra.mxu0 0.0
  %454 = vmatpush.msra.mxu0 0.0
  %455 = vmatpush.msra.mxu0 0.0
  %456 = vmatpush.msra.mxu0 0.0
  %457 = vmatpush.msra.mxu0 0.0
  %458 = vmatpush.msra.mxu0 0.0
  %459 = vmatpush.msra.mxu0 0.0
  %460 = vmatpush.msra.mxu0 0.0
  %v461 = vand.u32 %v405, 4294901760
  %v462 = vsub.f32 %v405, %v461
  %v463 = vand.u32 %v462, 4294901760
  %v464 = vsub.f32 %v462, %v463
  %v465 = vand.u32 %v464, 4294901760
  %466 = vmatpush.msra.mxu0 %v465
  %v467 = vand.u32 %v418, 4294901760
  %468 = vmatmul.f32.gmra.mxu0 %v467
  %v469 = vpop.f32.mrf.mxu0
  %v470 = vadd.f32 %v444, %v469
  %471 = vdwg.mxu0
  %472 = vmatpush.msra.mxu0 0.0
  %473 = vmatpush.msra.mxu0 0.0
  %474 = vmatpush.msra.mxu0 0.0
  %475 = vmatpush.msra.mxu0 0.0
  %476 = vmatpush.msra.mxu0 0.0
  %477 = vmatpush.msra.mxu0 0.0
  %478 = vmatpush.msra.mxu0 0.0
  %479 = vmatpush.msra.mxu0 0.0
  %480 = vmatpush.msra.mxu0 0.0
  %481 = vmatpush.msra.mxu0 0.0
  %482 = vmatpush.msra.mxu0 0.0
  %483 = vmatpush.msra.mxu0 0.0
  %484 = vmatpush.msra.mxu0 0.0
  %485 = vmatpush.msra.mxu0 0.0
  %486 = vmatpush.msra.mxu0 0.0
  %v487 = vand.u32 %v405, 4294901760
  %v488 = vsub.f32 %v405, %v487
  %489 = vmatpush.msra.mxu0 %v488
  %v490 = vand.u32 %v418, 4294901760
  %v491 = vsub.f32 %v418, %v490
  %492 = vmatmul.f32.gmra.mxu0 %v491
  %v493 = vpop.f32.mrf.mxu0
  %v494 = vadd.f32 %v470, %v493
  %495 = vdwg.mxu0
  %496 = vmatpush.msra.mxu0 0.0
  %497 = vmatpush.msra.mxu0 0.0
  %498 = vmatpush.msra.mxu0 0.0
  %499 = vmatpush.msra.mxu0 0.0
  %500 = vmatpush.msra.mxu0 0.0
  %501 = vmatpush.msra.mxu0 0.0
  %502 = vmatpush.msra.mxu0 0.0
  %503 = vmatpush.msra.mxu0 0.0
  %504 = vmatpush.msra.mxu0 0.0
  %505 = vmatpush.msra.mxu0 0.0
  %506 = vmatpush.msra.mxu0 0.0
  %507 = vmatpush.msra.mxu0 0.0
  %508 = vmatpush.msra.mxu0 0.0
  %509 = vmatpush.msra.mxu0 0.0
  %510 = vmatpush.msra.mxu0 0.0
  %v511 = vand.u32 %v405, 4294901760
  %512 = vmatpush.msra.mxu0 %v511
  %v513 = vand.u32 %v418, 4294901760
  %v514 = vsub.f32 %v418, %v513
  %v515 = vand.u32 %v514, 4294901760
  %516 = vmatmul.f32.gmra.mxu0 %v515
  %v517 = vpop.f32.mrf.mxu0
  %v518 = vadd.f32 %v494, %v517
  %519 = vdwg.mxu0
  %520 = vmatpush.msra.mxu0 0.0
  %521 = vmatpush.msra.mxu0 0.0
  %522 = vmatpush.msra.mxu0 0.0
  %523 = vmatpush.msra.mxu0 0.0
  %524 = vmatpush.msra.mxu0 0.0
  %525 = vmatpush.msra.mxu0 0.0
  %526 = vmatpush.msra.mxu0 0.0
  %527 = vmatpush.msra.mxu0 0.0
  %528 = vmatpush.msra.mxu0 0.0
  %529 = vmatpush.msra.mxu0 0.0
  %530 = vmatpush.msra.mxu0 0.0
  %531 = vmatpush.msra.mxu0 0.0
  %532 = vmatpush.msra.mxu0 0.0
  %533 = vmatpush.msra.mxu0 0.0
  %534 = vmatpush.msra.mxu0 0.0
  %v535 = vand.u32 %v405, 4294901760
  %v536 = vsub.f32 %v405, %v535
  %v537 = vand.u32 %v536, 4294901760
  %538 = vmatpush.msra.mxu0 %v537
  %v539 = vand.u32 %v418, 4294901760
  %540 = vmatmul.f32.gmra.mxu0 %v539
  %v541 = vpop.f32.mrf.mxu0
  %v542 = vadd.f32 %v518, %v541
  %543 = vdwg.mxu0
  %544 = vmatpush.msra.mxu0 0.0
  %545 = vmatpush.msra.mxu0 0.0
  %546 = vmatpush.msra.mxu0 0.0
  %547 = vmatpush.msra.mxu0 0.0
  %548 = vmatpush.msra.mxu0 0.0
  %549 = vmatpush.msra.mxu0 0.0
  %550 = vmatpush.msra.mxu0 0.0
  %551 = vmatpush.msra.mxu0 0.0
  %552 = vmatpush.msra.mxu0 0.0
  %553 = vmatpush.msra.mxu0 0.0
  %554 = vmatpush.msra.mxu0 0.0
  %555 = vmatpush.msra.mxu0 0.0
  %556 = vmatpush.msra.mxu0 0.0
  %557 = vmatpush.msra.mxu0 0.0
  %558 = vmatpush.msra.mxu0 0.0
  %v559 = vand.u32 %v405, 4294901760
  %560 = vmatpush.msra.mxu0 %v559
  %v561 = vand.u32 %v418, 4294901760
  %562 = vmatmul.f32.gmra.mxu0 %v561
  %v563 = vpop.f32.mrf.mxu0
  %v564 = vadd.f32 %v542, %v563
  %565 = vdwg.mxu0
  %vm566 = vcmask 257024
  %567 = vst.msk [vmem:[%s10] sm:$0xf] %vm566, %v564
  %v568 = vld [vmem:[%s8] sm:$0xf]
  %v569 = vld [vmem:[%s9] sm:$0xf]
  %571 = vset.pattern.permute.xlu0 0
  %572 = vperm.xlu0 %571, %v569
  %v573 = vpop.permute.xlu0 %572
  %v576 = vsel %vm416, %v568, 0
  %578 = vmatpush.msra.mxu0 0.0
  %579 = vmatpush.msra.mxu0 0.0
  %580 = vmatpush.msra.mxu0 0.0
  %581 = vmatpush.msra.mxu0 0.0
  %582 = vmatpush.msra.mxu0 0.0
  %583 = vmatpush.msra.mxu0 0.0
  %584 = vmatpush.msra.mxu0 0.0
  %585 = vmatpush.msra.mxu0 0.0
  %586 = vmatpush.msra.mxu0 0.0
  %587 = vmatpush.msra.mxu0 0.0
  %588 = vmatpush.msra.mxu0 0.0
  %589 = vmatpush.msra.mxu0 0.0
  %590 = vmatpush.msra.mxu0 0.0
  %591 = vmatpush.msra.mxu0 0.0
  %592 = vmatpush.msra.mxu0 0.0
  %v593 = vand.u32 %v408, 4294901760
  %594 = vmatpush.msra.mxu0 %v593
  %v595 = vand.u32 %v576, 4294901760
  %v596 = vsub.f32 %v576, %v595
  %v597 = vand.u32 %v596, 4294901760
  %v598 = vsub.f32 %v596, %v597
  %v599 = vand.u32 %v598, 4294901760
  %600 = vmatmul.f32.gmra.mxu0 %v599
  %v601 = vpop.f32.mrf.mxu0
  %v602 = vadd.f32 %v573, %v601
  %603 = vdwg.mxu0
  %604 = vmatpush.msra.mxu0 0.0
  %605 = vmatpush.msra.mxu0 0.0
  %606 = vmatpush.msra.mxu0 0.0
  %607 = vmatpush.msra.mxu0 0.0
  %608 = vmatpush.msra.mxu0 0.0
  %609 = vmatpush.msra.mxu0 0.0
  %610 = vmatpush.msra.mxu0 0.0
  %611 = vmatpush.msra.mxu0 0.0
  %612 = vmatpush.msra.mxu0 0.0
  %613 = vmatpush.msra.mxu0 0.0
  %614 = vmatpush.msra.mxu0 0.0
  %615 = vmatpush.msra.mxu0 0.0
  %616 = vmatpush.msra.mxu0 0.0
  %617 = vmatpush.msra.mxu0 0.0
  %618 = vmatpush.msra.mxu0 0.0
  %v619 = vand.u32 %v408, 4294901760
  %v620 = vsub.f32 %v408, %v619
  %v621 = vand.u32 %v620, 4294901760
  %v622 = vsub.f32 %v620, %v621
  %v623 = vand.u32 %v622, 4294901760
  %624 = vmatpush.msra.mxu0 %v623
  %v625 = vand.u32 %v576, 4294901760
  %626 = vmatmul.f32.gmra.mxu0 %v625
  %v627 = vpop.f32.mrf.mxu0
  %v628 = vadd.f32 %v602, %v627
  %629 = vdwg.mxu0
  %630 = vmatpush.msra.mxu0 0.0
  %631 = vmatpush.msra.mxu0 0.0
  %632 = vmatpush.msra.mxu0 0.0
  %633 = vmatpush.msra.mxu0 0.0
  %634 = vmatpush.msra.mxu0 0.0
  %635 = vmatpush.msra.mxu0 0.0
  %636 = vmatpush.msra.mxu0 0.0
  %637 = vmatpush.msra.mxu0 0.0
  %638 = vmatpush.msra.mxu0 0.0
  %639 = vmatpush.msra.mxu0 0.0
  %640 = vmatpush.msra.mxu0 0.0
  %641 = vmatpush.msra.mxu0 0.0
  %642 = vmatpush.msra.mxu0 0.0
  %643 = vmatpush.msra.mxu0 0.0
  %644 = vmatpush.msra.mxu0 0.0
  %v645 = vand.u32 %v408, 4294901760
  %v646 = vsub.f32 %v408, %v645
  %647 = vmatpush.msra.mxu0 %v646
  %v648 = vand.u32 %v576, 4294901760
  %v649 = vsub.f32 %v576, %v648
  %650 = vmatmul.f32.gmra.mxu0 %v649
  %v651 = vpop.f32.mrf.mxu0
  %v652 = vadd.f32 %v628, %v651
  %653 = vdwg.mxu0
  %654 = vmatpush.msra.mxu0 0.0
  %655 = vmatpush.msra.mxu0 0.0
  %656 = vmatpush.msra.mxu0 0.0
  %657 = vmatpush.msra.mxu0 0.0
  %658 = vmatpush.msra.mxu0 0.0
  %659 = vmatpush.msra.mxu0 0.0
  %660 = vmatpush.msra.mxu0 0.0
  %661 = vmatpush.msra.mxu0 0.0
  %662 = vmatpush.msra.mxu0 0.0
  %663 = vmatpush.msra.mxu0 0.0
  %664 = vmatpush.msra.mxu0 0.0
  %665 = vmatpush.msra.mxu0 0.0
  %666 = vmatpush.msra.mxu0 0.0
  %667 = vmatpush.msra.mxu0 0.0
  %668 = vmatpush.msra.mxu0 0.0
  %v669 = vand.u32 %v408, 4294901760
  %670 = vmatpush.msra.mxu0 %v669
  %v671 = vand.u32 %v576, 4294901760
  %v672 = vsub.f32 %v576, %v671
  %v673 = vand.u32 %v672, 4294901760
  %674 = vmatmul.f32.gmra.mxu0 %v673
  %v675 = vpop.f32.mrf.mxu0
  %v676 = vadd.f32 %v652, %v675
  %677 = vdwg.mxu0
  %678 = vmatpush.msra.mxu0 0.0
  %679 = vmatpush.msra.mxu0 0.0
  %680 = vmatpush.msra.mxu0 0.0
  %681 = vmatpush.msra.mxu0 0.0
  %682 = vmatpush.msra.mxu0 0.0
  %683 = vmatpush.msra.mxu0 0.0
  %684 = vmatpush.msra.mxu0 0.0
  %685 = vmatpush.msra.mxu0 0.0
  %686 = vmatpush.msra.mxu0 0.0
  %687 = vmatpush.msra.mxu0 0.0
  %688 = vmatpush.msra.mxu0 0.0
  %689 = vmatpush.msra.mxu0 0.0
  %690 = vmatpush.msra.mxu0 0.0
  %691 = vmatpush.msra.mxu0 0.0
  %692 = vmatpush.msra.mxu0 0.0
  %v693 = vand.u32 %v408, 4294901760
  %v694 = vsub.f32 %v408, %v693
  %v695 = vand.u32 %v694, 4294901760
  %696 = vmatpush.msra.mxu0 %v695
  %v697 = vand.u32 %v576, 4294901760
  %698 = vmatmul.f32.gmra.mxu0 %v697
  %v699 = vpop.f32.mrf.mxu0
  %v700 = vadd.f32 %v676, %v699
  %701 = vdwg.mxu0
  %702 = vmatpush.msra.mxu0 0.0
  %703 = vmatpush.msra.mxu0 0.0
  %704 = vmatpush.msra.mxu0 0.0
  %705 = vmatpush.msra.mxu0 0.0
  %706 = vmatpush.msra.mxu0 0.0
  %707 = vmatpush.msra.mxu0 0.0
  %708 = vmatpush.msra.mxu0 0.0
  %709 = vmatpush.msra.mxu0 0.0
  %710 = vmatpush.msra.mxu0 0.0
  %711 = vmatpush.msra.mxu0 0.0
  %712 = vmatpush.msra.mxu0 0.0
  %713 = vmatpush.msra.mxu0 0.0
  %714 = vmatpush.msra.mxu0 0.0
  %715 = vmatpush.msra.mxu0 0.0
  %716 = vmatpush.msra.mxu0 0.0
  %v717 = vand.u32 %v408, 4294901760
  %718 = vmatpush.msra.mxu0 %v717
  %v719 = vand.u32 %v576, 4294901760
  %720 = vmatmul.f32.gmra.mxu0 %v719
  %v721 = vpop.f32.mrf.mxu0
  %v722 = vadd.f32 %v700, %v721
  %723 = vdwg.mxu0
  %724 = vst.msk [vmem:[%s11] sm:$0xf] %vm566, %v722
  // Predicated region
  $region42: #{coordinate_attention.4} parent=0 // pred_check
    _
  $region43: #{coordinate_attention.4} parent=0 // pred_check_branch
    %726 = sbr.rel (0) target = $region45
  $region44: #{coordinate_attention.4} parent=0 // pred_region
    _
  $region45: #{coordinate_attention.4} parent=0 // pred_fallthru
    _
  // Predicated region
  $region46: #{coordinate_attention.4} parent=0 // pred_check
    _
  $region47: #{coordinate_attention.4} parent=0 // pred_check_branch
    %728 = sbr.rel (0) target = $region49
  $region48: #{coordinate_attention.4} parent=0 // pred_region
    _
  $region49: #{coordinate_attention.4} parent=0 // pred_fallthru
    _
  // Predicated region
  $region50: #{coordinate_attention.4} parent=0 // pred_check
    _
  $region51: #{coordinate_attention.4} parent=0 // pred_check_branch
    %730 = sbr.rel (0) target = $region53
  $region52: #{coordinate_attention.4} parent=0 // pred_region
    _
  $region53: #{coordinate_attention.4} parent=0 // pred_fallthru
    _
  // Predicated region
  $region54: #{coordinate_attention.4} parent=0 // pred_check
    _
  $region55: #{coordinate_attention.4} parent=0 // pred_check_branch
    %732 = sbr.rel (0) target = $region57
  $region56: #{coordinate_attention.4} parent=0 // pred_region
    _
  $region57: #{coordinate_attention.4} parent=0 // pred_fallthru
    _

</llo_original>
